<compile_context>
chip_gen: v7x
topology: tpu7x:2x2x1
jax: 0.10.0
libtpu: 0.0.40
codegen_flags: <defaults>
</compile_context>

<pallas_src>
import functools

import jax
import jax.numpy as jnp
from jax import lax
from jax.experimental import pallas as pl
from jax.experimental.pallas import tpu as pltpu

EPS = 1e-5  # nn.BatchNorm2d default eps


# ---------------------------------------------------------------------------
# Kernels
# ---------------------------------------------------------------------------
def conv_stats_kernel(taps_ref, w_ref, sum_ref, sumsq_ref):
    """Single MXU matmul conv + accumulate per-channel sum / sum-of-squares."""
    @pl.when(pl.program_id(0) == 0)
    def _():
        sum_ref[...] = jnp.zeros_like(sum_ref)
        sumsq_ref[...] = jnp.zeros_like(sumsq_ref)

    y = jnp.dot(taps_ref[...], w_ref[...], preferred_element_type=jnp.float32)
    sum_ref[...] += jnp.sum(y, axis=0, keepdims=True)
    sumsq_ref[...] += jnp.sum(y * y, axis=0, keepdims=True)


def _bn_coeffs(sum_ref, sumsq_ref, g_ref, b_ref, inv_m):
    """Fused training-mode BN scale/shift from global sum / sumsq."""
    mean = sum_ref[...] * inv_m
    var = jnp.maximum(sumsq_ref[...] * inv_m - mean * mean, 0.0)
    inv = lax.rsqrt(var + EPS)
    scale = g_ref[...] * inv
    shift = b_ref[...] - mean * scale
    return scale, shift


def conv_bn_relu_kernel(taps_ref, w_ref, sum_ref, sumsq_ref, g_ref, b_ref,
                        o_ref, *, inv_m):
    scale, shift = _bn_coeffs(sum_ref, sumsq_ref, g_ref, b_ref, inv_m)
    y = jnp.dot(taps_ref[...], w_ref[...], preferred_element_type=jnp.float32)
    o_ref[...] = jnp.maximum(y * scale + shift, 0.0).astype(o_ref.dtype)


def conv_bn_add_relu_kernel(taps_ref, w_ref, sum_ref, sumsq_ref, g_ref, b_ref,
                            res_ref, o_ref, *, inv_m):
    scale, shift = _bn_coeffs(sum_ref, sumsq_ref, g_ref, b_ref, inv_m)
    y = jnp.dot(taps_ref[...], w_ref[...], preferred_element_type=jnp.float32)
    y = y * scale + shift + res_ref[...]
    o_ref[...] = jnp.maximum(y, 0.0).astype(o_ref.dtype)


# ---------------------------------------------------------------------------
# pallas_call wrappers
# ---------------------------------------------------------------------------
def _conv_stats(taps, w, tile_m):
    m, kp = taps.shape
    cp = w.shape[1]
    row = lambda i: (i, 0)
    vec = lambda i: (0, 0)
    return pl.pallas_call(
        conv_stats_kernel,
        out_shape=(jax.ShapeDtypeStruct((1, cp), jnp.float32),
                   jax.ShapeDtypeStruct((1, cp), jnp.float32)),
        grid=(m // tile_m,),
        in_specs=[pl.BlockSpec((tile_m, kp), row),
                  pl.BlockSpec((kp, cp), vec)],
        out_specs=(pl.BlockSpec((1, cp), vec),
                   pl.BlockSpec((1, cp), vec)),
        compiler_params=pltpu.CompilerParams(
            dimension_semantics=("arbitrary",)),
    )(taps, w)


def _conv_bn_apply(kernel, taps, w, s, ss, g, b, tile_m, extra=()):
    m, kp = taps.shape
    cp = w.shape[1]
    row = lambda i: (i, 0)
    vec = lambda i: (0, 0)
    in_arrays = (taps, w, s, ss, g, b) + tuple(extra)
    in_specs = [pl.BlockSpec((tile_m, kp), row),
                pl.BlockSpec((kp, cp), vec),
                pl.BlockSpec((1, cp), vec),
                pl.BlockSpec((1, cp), vec),
                pl.BlockSpec((1, cp), vec),
                pl.BlockSpec((1, cp), vec)]
    for _ in extra:  # residual tiles follow the row tiling
        in_specs.append(pl.BlockSpec((tile_m, cp), row))
    return pl.pallas_call(
        functools.partial(kernel, inv_m=1.0 / m),
        out_shape=jax.ShapeDtypeStruct((m, cp), jnp.float32),
        grid=(m // tile_m,),
        in_specs=in_specs,
        out_specs=pl.BlockSpec((tile_m, cp), row),
        compiler_params=pltpu.CompilerParams(
            dimension_semantics=("parallel",)),
    )(*in_arrays)


# ---------------------------------------------------------------------------
# JAX glue (layout only: padding / tap concat / reshapes)
# ---------------------------------------------------------------------------
def _round_up(x, mult):
    return ((x + mult - 1) // mult) * mult


def _pick_tile(m, cap=256):
    """Largest multiple of 8 that divides M and is <= cap (else M itself)."""
    for t in range(min(cap, m), 7, -8):
        if m % t == 0:
            return t
    return m


def _im2col_concat(x_nhwc, kp):
    """(N, H, W, C) -> (N*H*W, KP): the compact (M, 9*Cin) tap layout."""
    n, h, w, c = x_nhwc.shape
    xp = jnp.pad(x_nhwc, ((0, 0), (1, 1), (1, 1), (0, 0)))
    taps = jnp.concatenate(
        [xp[:, dy:dy + h, dx:dx + w, :] for dy in range(3) for dx in range(3)],
        axis=-1).reshape(n * h * w, 9 * c)
    if kp > 9 * c:
        taps = jnp.pad(taps, ((0, 0), (0, kp - 9 * c)))
    return taps


def basic_block_forward(x_nchw, params):
    """Forward of BasicBlock(in_planes=C, planes=C, stride=1)."""
    (w1, cb1, g1, b1, w2, cb2, g2, b2) = params
    del cb1, cb2  # conv bias cancels exactly under training-mode BatchNorm

    n, c, h, w = x_nchw.shape
    x = jnp.transpose(x_nchw, (0, 2, 3, 1)).astype(jnp.float32)  # NCHW -> NHWC
    m = n * h * w
    k = 9 * c
    kp = _round_up(max(k, 128), 128)   # lane-dense contraction dim
    cp = _round_up(max(c, 128), 128)   # lane-dense channel dim
    tile_m = _pick_tile(m)

    def pad_w(wt):  # HWIO (3,3,Cin,Cout) -> (KP, CP), zero padded
        wk = wt.reshape(k, c).astype(jnp.float32)
        return jnp.pad(wk, ((0, kp - k), (0, cp - c)))

    def pad_vec(v):  # (C,) -> (1, CP), zero padded
        return jnp.pad(v.astype(jnp.float32), (0, cp - c)).reshape(1, cp)

    w1p, w2p = pad_w(w1), pad_w(w2)
    g1p, b1p, g2p, b2p = (pad_vec(v) for v in (g1, b1, g2, b2))

    # ----- stage 1: conv1 -> bn1 -> relu -----
    taps1 = _im2col_concat(x, kp)                              # (M, KP)
    s1, ss1 = _conv_stats(taps1, w1p, tile_m)
    y1 = _conv_bn_apply(conv_bn_relu_kernel, taps1, w1p, s1, ss1,
                        g1p, b1p, tile_m)                      # (M, CP)

    # ----- stage 2: conv2 -> bn2 -> (+ identity shortcut) -> relu -----
    y1_img = y1[:, :c].reshape(n, h, w, c)
    taps2 = _im2col_concat(y1_img, kp)                         # (M, KP)
    res = jnp.pad(x.reshape(m, c), ((0, 0), (0, cp - c)))      # (M, CP)
    s2, ss2 = _conv_stats(taps2, w2p, tile_m)
    out = _conv_bn_apply(conv_bn_add_relu_kernel, taps2, w2p, s2, ss2,
                         g2p, b2p, tile_m, extra=(res,))       # (M, CP)

    out = out[:, :c].reshape(n, h, w, c)
    return jnp.transpose(out, (0, 3, 1, 2))                    # NHWC -> NCHW


# ---------------------------------------------------------------------------
# Pure-JAX reference (for numerical verification)
# ---------------------------------------------------------------------------
def ref_forward(x_nchw, params):
    (w1, cb1, g1, b1, w2, cb2, g2, b2) = params

    def conv(x, w_hwio, cb):
        y = lax.conv_general_dilated(
            x, w_hwio, window_strides=(1, 1), padding=((1, 1), (1, 1)),
            dimension_numbers=("NCHW", "HWIO", "NCHW"))
        return y + cb.reshape(1, -1, 1, 1)

    def bn(x, g, b):
        mean = jnp.mean(x, axis=(0, 2, 3), keepdims=True)
        var = jnp.mean(jnp.square(x - mean), axis=(0, 2, 3), keepdims=True)
        return ((x - mean) * lax.rsqrt(var + EPS)
                * g.reshape(1, -1, 1, 1) + b.reshape(1, -1, 1, 1))

    out = jax.nn.relu(bn(conv(x_nchw, w1, cb1), g1, b1))
    out = bn(conv(out, w2, cb2), g2, b2)
    out = out + x_nchw
    return jax.nn.relu(out)


# ---------------------------------------------------------------------------
if __name__ == "__main__":
    N, C, H, W = 2, 4, 16, 16   # in_planes = planes = 4, stride = 1
    key = jax.random.PRNGKey(0)
    ks = jax.random.split(key, 9)

    x = jax.random.normal(ks[0], (N, C, H, W), jnp.float32)

    # Deterministic synthetic parameters (shapes per nn.Conv2d / nn.BatchNorm2d).
    # Conv weights stored HWIO = (3, 3, Cin, Cout); biases / BN params (C,).
    w1 = 0.2 * jax.random.normal(ks[1], (3, 3, C, C), jnp.float32)
    cb1 = 0.05 * jax.random.normal(ks[2], (C,), jnp.float32)
    g1 = 1.0 + 0.1 * jax.random.normal(ks[3], (C,), jnp.float32)
    b1 = 0.1 * jax.random.normal(ks[4], (C,), jnp.float32)
    w2 = 0.2 * jax.random.normal(ks[5], (3, 3, C, C), jnp.float32)
    cb2 = 0.05 * jax.random.normal(ks[6], (C,), jnp.float32)
    g2 = 1.0 + 0.1 * jax.random.normal(ks[7], (C,), jnp.float32)
    b2 = 0.1 * jax.random.normal(ks[8], (C,), jnp.float32)
    params = (w1, cb1, g1, b1, w2, cb2, g2, b2)

    out = jax.jit(basic_block_forward)(x, params)
    out = jax.block_until_ready(out)

    ref = ref_forward(x, params)
    assert out.shape == x.shape, (out.shape, x.shape)
    max_err = float(jnp.max(jnp.abs(out - ref)))
    assert jnp.allclose(out, ref, atol=5e-4, rtol=5e-4), max_err

    print("KERNEL_OK")
</pallas_src>

<mosaic_0001>
module attributes {stable_mosaic.version = 11 : i64} {
  func.func @conv_bn_relu_kernel(%arg0: i32, %arg1: memref<256x128xf32, #tpu.memory_space<vmem>>, %arg2: memref<128x128xf32, #tpu.memory_space<vmem>>, %arg3: memref<1x128xf32, #tpu.memory_space<vmem>>, %arg4: memref<1x128xf32, #tpu.memory_space<vmem>>, %arg5: memref<1x128xf32, #tpu.memory_space<vmem>>, %arg6: memref<1x128xf32, #tpu.memory_space<vmem>>, %arg7: memref<256x128xf32, #tpu.memory_space<vmem>>) attributes {dimension_semantics = [#tpu.dimension_semantics<parallel>], iteration_bounds = array<i64: 2>, scalar_prefetch = 0 : i64, scratch_operands = 0 : i64, tpu.core_type = #tpu.core_type<tc>, window_params = [{transform_indices = @transform_0, window_bounds = array<i64: 256, 128>}, {pipeline_mode = #tpu.pipeline_mode<synchronous>, transform_indices = @transform_1, window_bounds = array<i64: 128, 128>}, {pipeline_mode = #tpu.pipeline_mode<synchronous>, transform_indices = @transform_2, window_bounds = array<i64: 1, 128>}, {pipeline_mode = #tpu.pipeline_mode<synchronous>, transform_indices = @transform_3, window_bounds = array<i64: 1, 128>}, {pipeline_mode = #tpu.pipeline_mode<synchronous>, transform_indices = @transform_4, window_bounds = array<i64: 1, 128>}, {pipeline_mode = #tpu.pipeline_mode<synchronous>, transform_indices = @transform_5, window_bounds = array<i64: 1, 128>}, {transform_indices = @transform_6, window_bounds = array<i64: 256, 128>}]} {
    %c0 = arith.constant 0 : index
    %c0_0 = arith.constant 0 : index
    %0 = vector.load %arg3[%c0, %c0_0] : memref<1x128xf32, #tpu.memory_space<vmem>>, vector<1x128xf32>
    %cst = arith.constant 0.001953125 : f32
    %1 = vector.broadcast %cst : f32 to vector<1x128xf32>
    %2 = arith.mulf %0, %1 : vector<1x128xf32>
    %c0_1 = arith.constant 0 : index
    %c0_2 = arith.constant 0 : index
    %3 = vector.load %arg4[%c0_1, %c0_2] : memref<1x128xf32, #tpu.memory_space<vmem>>, vector<1x128xf32>
    %cst_3 = arith.constant 0.001953125 : f32
    %4 = vector.broadcast %cst_3 : f32 to vector<1x128xf32>
    %5 = arith.mulf %3, %4 : vector<1x128xf32>
    %6 = arith.mulf %2, %2 : vector<1x128xf32>
    %7 = arith.subf %5, %6 : vector<1x128xf32>
    %cst_4 = arith.constant 0.000000e+00 : f32
    %8 = vector.broadcast %cst_4 : f32 to vector<1x128xf32>
    %9 = arith.maximumf %7, %8 : vector<1x128xf32>
    %cst_5 = arith.constant 9.99999974E-6 : f32
    %10 = vector.broadcast %cst_5 : f32 to vector<1x128xf32>
    %11 = arith.addf %9, %10 : vector<1x128xf32>
    %12 = math.rsqrt %11 : vector<1x128xf32>
    %c0_6 = arith.constant 0 : index
    %c0_7 = arith.constant 0 : index
    %13 = vector.load %arg5[%c0_6, %c0_7] : memref<1x128xf32, #tpu.memory_space<vmem>>, vector<1x128xf32>
    %14 = arith.mulf %13, %12 : vector<1x128xf32>
    %c0_8 = arith.constant 0 : index
    %c0_9 = arith.constant 0 : index
    %15 = vector.load %arg6[%c0_8, %c0_9] : memref<1x128xf32, #tpu.memory_space<vmem>>, vector<1x128xf32>
    %16 = arith.mulf %2, %14 : vector<1x128xf32>
    %17 = arith.subf %15, %16 : vector<1x128xf32>
    %c0_10 = arith.constant 0 : index
    %c0_11 = arith.constant 0 : index
    %18 = vector.load %arg1[%c0_10, %c0_11] : memref<256x128xf32, #tpu.memory_space<vmem>>, vector<256x128xf32>
    %c0_12 = arith.constant 0 : index
    %c0_13 = arith.constant 0 : index
    %19 = vector.load %arg2[%c0_12, %c0_13] : memref<128x128xf32, #tpu.memory_space<vmem>>, vector<128x128xf32>
    %cst_14 = arith.constant dense<0.000000e+00> : vector<256x128xf32>
    %20 = tpu.matmul %18, %19, %cst_14 {dimension_numbers = #tpu.dot_dimension_numbers<[1], [0], [0], [1], [0, 0, 1, 1], [], []>} : vector<256x128xf32>, vector<128x128xf32>, vector<256x128xf32> -> vector<256x128xf32>
    %21 = vector.broadcast %14 : vector<1x128xf32> to vector<256x128xf32>
    %22 = arith.mulf %20, %21 : vector<256x128xf32>
    %23 = vector.broadcast %17 : vector<1x128xf32> to vector<256x128xf32>
    %24 = arith.addf %22, %23 : vector<256x128xf32>
    %cst_15 = arith.constant 0.000000e+00 : f32
    %25 = vector.broadcast %cst_15 : f32 to vector<256x128xf32>
    %26 = arith.maximumf %24, %25 : vector<256x128xf32>
    %c0_16 = arith.constant 0 : index
    %c0_17 = arith.constant 0 : index
    %27 = vector.load %arg7[%c0_16, %c0_17] : memref<256x128xf32, #tpu.memory_space<vmem>>, vector<256x128xf32>
    tpu.vector_store %arg7[%c0_16, %c0_17], %26 {strides = array<i32>} : memref<256x128xf32, #tpu.memory_space<vmem>>, vector<256x128xf32>,
    return
  }
  func.func @transform_0(%arg0: i32) -> (i32, i32) {
    %c0_i32 = arith.constant 0 : i32
    %c0_i32_0 = arith.constant 0 : i32
    return %arg0, %c0_i32 : i32, i32
  }
  func.func @transform_1(%arg0: i32) -> (i32, i32) {
    %c0_i32 = arith.constant 0 : i32
    %c0_i32_0 = arith.constant 0 : i32
    %c0_i32_1 = arith.constant 0 : i32
    return %c0_i32, %c0_i32_0 : i32, i32
  }
  func.func @transform_2(%arg0: i32) -> (i32, i32) {
    %c0_i32 = arith.constant 0 : i32
    %c0_i32_0 = arith.constant 0 : i32
    %c0_i32_1 = arith.constant 0 : i32
    return %c0_i32, %c0_i32_0 : i32, i32
  }
  func.func @transform_3(%arg0: i32) -> (i32, i32) {
    %c0_i32 = arith.constant 0 : i32
    %c0_i32_0 = arith.constant 0 : i32
    %c0_i32_1 = arith.constant 0 : i32
    return %c0_i32, %c0_i32_0 : i32, i32
  }
  func.func @transform_4(%arg0: i32) -> (i32, i32) {
    %c0_i32 = arith.constant 0 : i32
    %c0_i32_0 = arith.constant 0 : i32
    %c0_i32_1 = arith.constant 0 : i32
    return %c0_i32, %c0_i32_0 : i32, i32
  }
  func.func @transform_5(%arg0: i32) -> (i32, i32) {
    %c0_i32 = arith.constant 0 : i32
    %c0_i32_0 = arith.constant 0 : i32
    %c0_i32_1 = arith.constant 0 : i32
    return %c0_i32, %c0_i32_0 : i32, i32
  }
  func.func @transform_6(%arg0: i32) -> (i32, i32) {
    %c0_i32 = arith.constant 0 : i32
    %c0_i32_0 = arith.constant 0 : i32
    return %arg0, %c0_i32 : i32, i32
  }
}

module attributes {stable_mosaic.version = 11 : i64} {
  func.func @conv_stats_kernel(%arg0: i32, %arg1: memref<256x128xf32, #tpu.memory_space<vmem>>, %arg2: memref<128x128xf32, #tpu.memory_space<vmem>>, %arg3: memref<1x128xf32, #tpu.memory_space<vmem>>, %arg4: memref<1x128xf32, #tpu.memory_space<vmem>>) attributes {dimension_semantics = [#tpu.dimension_semantics<arbitrary>], iteration_bounds = array<i64: 2>, scalar_prefetch = 0 : i64, scratch_operands = 0 : i64, tpu.core_type = #tpu.core_type<tc>, window_params = [{transform_indices = @transform_0, window_bounds = array<i64: 256, 128>}, {pipeline_mode = #tpu.pipeline_mode<synchronous>, transform_indices = @transform_1, window_bounds = array<i64: 128, 128>}, {pipeline_mode = #tpu.pipeline_mode<synchronous>, transform_indices = @transform_2, window_bounds = array<i64: 1, 128>}, {pipeline_mode = #tpu.pipeline_mode<synchronous>, transform_indices = @transform_3, window_bounds = array<i64: 1, 128>}]} {
    %c0_i32 = arith.constant 0 : i32
    %0 = arith.cmpi eq, %arg0, %c0_i32 : i32
    %1 = arith.extui %0 : i1 to i32
    %c0_i32_0 = arith.constant 0 : i32
    %2 = arith.cmpi ne, %1, %c0_i32_0 : i32
    scf.if %2 {
      %cst_14 = arith.constant 0.000000e+00 : f32
      %17 = vector.broadcast %cst_14 : f32 to vector<1x128xf32>
      %c0_15 = arith.constant 0 : index
      %c0_16 = arith.constant 0 : index
      %18 = vector.load %arg3[%c0_15, %c0_16] : memref<1x128xf32, #tpu.memory_space<vmem>>, vector<1x128xf32>
      tpu.vector_store %arg3[%c0_15, %c0_16], %17 {strides = array<i32>} : memref<1x128xf32, #tpu.memory_space<vmem>>, vector<1x128xf32>,
      %cst_17 = arith.constant 0.000000e+00 : f32
      %19 = vector.broadcast %cst_17 : f32 to vector<1x128xf32>
      %c0_18 = arith.constant 0 : index
      %c0_19 = arith.constant 0 : index
      %20 = vector.load %arg4[%c0_18, %c0_19] : memref<1x128xf32, #tpu.memory_space<vmem>>, vector<1x128xf32>
      tpu.vector_store %arg4[%c0_18, %c0_19], %19 {strides = array<i32>} : memref<1x128xf32, #tpu.memory_space<vmem>>, vector<1x128xf32>,
    } else {
    }
    %c0 = arith.constant 0 : index
    %c0_1 = arith.constant 0 : index
    %3 = vector.load %arg1[%c0, %c0_1] : memref<256x128xf32, #tpu.memory_space<vmem>>, vector<256x128xf32>
    %c0_2 = arith.constant 0 : index
    %c0_3 = arith.constant 0 : index
    %4 = vector.load %arg2[%c0_2, %c0_3] : memref<128x128xf32, #tpu.memory_space<vmem>>, vector<128x128xf32>
    %cst = arith.constant dense<0.000000e+00> : vector<256x128xf32>
    %5 = tpu.matmul %3, %4, %cst {dimension_numbers = #tpu.dot_dimension_numbers<[1], [0], [0], [1], [0, 0, 1, 1], [], []>} : vector<256x128xf32>, vector<128x128xf32>, vector<256x128xf32> -> vector<256x128xf32>
    %c0_4 = arith.constant 0 : index
    %c0_5 = arith.constant 0 : index
    %6 = vector.load %arg3[%c0_4, %c0_5] : memref<1x128xf32, #tpu.memory_space<vmem>>, vector<1x128xf32>
    %cst_6 = arith.constant dense<0.000000e+00> : vector<128xf32>
    %7 = vector.multi_reduction <add>, %5, %cst_6 [0] : vector<256x128xf32> to vector<128xf32>
    %8 = vector.shape_cast %7 : vector<128xf32> to vector<1x128xf32>
    %9 = arith.addf %6, %8 : vector<1x128xf32>
    %c0_7 = arith.constant 0 : index
    %c0_8 = arith.constant 0 : index
    %10 = vector.load %arg3[%c0_7, %c0_8] : memref<1x128xf32, #tpu.memory_space<vmem>>, vector<1x128xf32>
    tpu.vector_store %arg3[%c0_7, %c0_8], %9 {strides = array<i32>} : memref<1x128xf32, #tpu.memory_space<vmem>>, vector<1x128xf32>,
    %c0_9 = arith.constant 0 : index
    %c0_10 = arith.constant 0 : index
    %11 = vector.load %arg4[%c0_9, %c0_10] : memref<1x128xf32, #tpu.memory_space<vmem>>, vector<1x128xf32>
    %12 = arith.mulf %5, %5 : vector<256x128xf32>
    %cst_11 = arith.constant dense<0.000000e+00> : vector<128xf32>
    %13 = vector.multi_reduction <add>, %12, %cst_11 [0] : vector<256x128xf32> to vector<128xf32>
    %14 = vector.shape_cast %13 : vector<128xf32> to vector<1x128xf32>
    %15 = arith.addf %11, %14 : vector<1x128xf32>
    %c0_12 = arith.constant 0 : index
    %c0_13 = arith.constant 0 : index
    %16 = vector.load %arg4[%c0_12, %c0_13] : memref<1x128xf32, #tpu.memory_space<vmem>>, vector<1x128xf32>
    tpu.vector_store %arg4[%c0_12, %c0_13], %15 {strides = array<i32>} : memref<1x128xf32, #tpu.memory_space<vmem>>, vector<1x128xf32>,
    return
  }
  func.func @transform_0(%arg0: i32) -> (i32, i32) {
    %c0_i32 = arith.constant 0 : i32
    %c0_i32_0 = arith.constant 0 : i32
    return %arg0, %c0_i32 : i32, i32
  }
  func.func @transform_1(%arg0: i32) -> (i32, i32) {
    %c0_i32 = arith.constant 0 : i32
    %c0_i32_0 = arith.constant 0 : i32
    %c0_i32_1 = arith.constant 0 : i32
    return %c0_i32, %c0_i32_0 : i32, i32
  }
  func.func @transform_2(%arg0: i32) -> (i32, i32) {
    %c0_i32 = arith.constant 0 : i32
    %c0_i32_0 = arith.constant 0 : i32
    %c0_i32_1 = arith.constant 0 : i32
    return %c0_i32, %c0_i32_0 : i32, i32
  }
  func.func @transform_3(%arg0: i32) -> (i32, i32) {
    %c0_i32 = arith.constant 0 : i32
    %c0_i32_0 = arith.constant 0 : i32
    %c0_i32_1 = arith.constant 0 : i32
    return %c0_i32, %c0_i32_0 : i32, i32
  }
}

module attributes {stable_mosaic.version = 11 : i64} {
  func.func @conv_bn_add_relu_kernel(%arg0: i32, %arg1: memref<256x128xf32, #tpu.memory_space<vmem>>, %arg2: memref<128x128xf32, #tpu.memory_space<vmem>>, %arg3: memref<1x128xf32, #tpu.memory_space<vmem>>, %arg4: memref<1x128xf32, #tpu.memory_space<vmem>>, %arg5: memref<1x128xf32, #tpu.memory_space<vmem>>, %arg6: memref<1x128xf32, #tpu.memory_space<vmem>>, %arg7: memref<256x128xf32, #tpu.memory_space<vmem>>, %arg8: memref<256x128xf32, #tpu.memory_space<vmem>>) attributes {dimension_semantics = [#tpu.dimension_semantics<parallel>], iteration_bounds = array<i64: 2>, scalar_prefetch = 0 : i64, scratch_operands = 0 : i64, tpu.core_type = #tpu.core_type<tc>, window_params = [{transform_indices = @transform_0, window_bounds = array<i64: 256, 128>}, {pipeline_mode = #tpu.pipeline_mode<synchronous>, transform_indices = @transform_1, window_bounds = array<i64: 128, 128>}, {pipeline_mode = #tpu.pipeline_mode<synchronous>, transform_indices = @transform_2, window_bounds = array<i64: 1, 128>}, {pipeline_mode = #tpu.pipeline_mode<synchronous>, transform_indices = @transform_3, window_bounds = array<i64: 1, 128>}, {pipeline_mode = #tpu.pipeline_mode<synchronous>, transform_indices = @transform_4, window_bounds = array<i64: 1, 128>}, {pipeline_mode = #tpu.pipeline_mode<synchronous>, transform_indices = @transform_5, window_bounds = array<i64: 1, 128>}, {transform_indices = @transform_6, window_bounds = array<i64: 256, 128>}, {transform_indices = @transform_7, window_bounds = array<i64: 256, 128>}]} {
    %c0 = arith.constant 0 : index
    %c0_0 = arith.constant 0 : index
    %0 = vector.load %arg3[%c0, %c0_0] : memref<1x128xf32, #tpu.memory_space<vmem>>, vector<1x128xf32>
    %cst = arith.constant 0.001953125 : f32
    %1 = vector.broadcast %cst : f32 to vector<1x128xf32>
    %2 = arith.mulf %0, %1 : vector<1x128xf32>
    %c0_1 = arith.constant 0 : index
    %c0_2 = arith.constant 0 : index
    %3 = vector.load %arg4[%c0_1, %c0_2] : memref<1x128xf32, #tpu.memory_space<vmem>>, vector<1x128xf32>
    %cst_3 = arith.constant 0.001953125 : f32
    %4 = vector.broadcast %cst_3 : f32 to vector<1x128xf32>
    %5 = arith.mulf %3, %4 : vector<1x128xf32>
    %6 = arith.mulf %2, %2 : vector<1x128xf32>
    %7 = arith.subf %5, %6 : vector<1x128xf32>
    %cst_4 = arith.constant 0.000000e+00 : f32
    %8 = vector.broadcast %cst_4 : f32 to vector<1x128xf32>
    %9 = arith.maximumf %7, %8 : vector<1x128xf32>
    %cst_5 = arith.constant 9.99999974E-6 : f32
    %10 = vector.broadcast %cst_5 : f32 to vector<1x128xf32>
    %11 = arith.addf %9, %10 : vector<1x128xf32>
    %12 = math.rsqrt %11 : vector<1x128xf32>
    %c0_6 = arith.constant 0 : index
    %c0_7 = arith.constant 0 : index
    %13 = vector.load %arg5[%c0_6, %c0_7] : memref<1x128xf32, #tpu.memory_space<vmem>>, vector<1x128xf32>
    %14 = arith.mulf %13, %12 : vector<1x128xf32>
    %c0_8 = arith.constant 0 : index
    %c0_9 = arith.constant 0 : index
    %15 = vector.load %arg6[%c0_8, %c0_9] : memref<1x128xf32, #tpu.memory_space<vmem>>, vector<1x128xf32>
    %16 = arith.mulf %2, %14 : vector<1x128xf32>
    %17 = arith.subf %15, %16 : vector<1x128xf32>
    %c0_10 = arith.constant 0 : index
    %c0_11 = arith.constant 0 : index
    %18 = vector.load %arg1[%c0_10, %c0_11] : memref<256x128xf32, #tpu.memory_space<vmem>>, vector<256x128xf32>
    %c0_12 = arith.constant 0 : index
    %c0_13 = arith.constant 0 : index
    %19 = vector.load %arg2[%c0_12, %c0_13] : memref<128x128xf32, #tpu.memory_space<vmem>>, vector<128x128xf32>
    %cst_14 = arith.constant dense<0.000000e+00> : vector<256x128xf32>
    %20 = tpu.matmul %18, %19, %cst_14 {dimension_numbers = #tpu.dot_dimension_numbers<[1], [0], [0], [1], [0, 0, 1, 1], [], []>} : vector<256x128xf32>, vector<128x128xf32>, vector<256x128xf32> -> vector<256x128xf32>
    %21 = vector.broadcast %14 : vector<1x128xf32> to vector<256x128xf32>
    %22 = arith.mulf %20, %21 : vector<256x128xf32>
    %23 = vector.broadcast %17 : vector<1x128xf32> to vector<256x128xf32>
    %24 = arith.addf %22, %23 : vector<256x128xf32>
    %c0_15 = arith.constant 0 : index
    %c0_16 = arith.constant 0 : index
    %25 = vector.load %arg7[%c0_15, %c0_16] : memref<256x128xf32, #tpu.memory_space<vmem>>, vector<256x128xf32>
    %26 = arith.addf %24, %25 : vector<256x128xf32>
    %cst_17 = arith.constant 0.000000e+00 : f32
    %27 = vector.broadcast %cst_17 : f32 to vector<256x128xf32>
    %28 = arith.maximumf %26, %27 : vector<256x128xf32>
    %c0_18 = arith.constant 0 : index
    %c0_19 = arith.constant 0 : index
    %29 = vector.load %arg8[%c0_18, %c0_19] : memref<256x128xf32, #tpu.memory_space<vmem>>, vector<256x128xf32>
    tpu.vector_store %arg8[%c0_18, %c0_19], %28 {strides = array<i32>} : memref<256x128xf32, #tpu.memory_space<vmem>>, vector<256x128xf32>,
    return
  }
  func.func @transform_0(%arg0: i32) -> (i32, i32) {
    %c0_i32 = arith.constant 0 : i32
    %c0_i32_0 = arith.constant 0 : i32
    return %arg0, %c0_i32 : i32, i32
  }
  func.func @transform_1(%arg0: i32) -> (i32, i32) {
    %c0_i32 = arith.constant 0 : i32
    %c0_i32_0 = arith.constant 0 : i32
    %c0_i32_1 = arith.constant 0 : i32
    return %c0_i32, %c0_i32_0 : i32, i32
  }
  func.func @transform_2(%arg0: i32) -> (i32, i32) {
    %c0_i32 = arith.constant 0 : i32
    %c0_i32_0 = arith.constant 0 : i32
    %c0_i32_1 = arith.constant 0 : i32
    return %c0_i32, %c0_i32_0 : i32, i32
  }
  func.func @transform_3(%arg0: i32) -> (i32, i32) {
    %c0_i32 = arith.constant 0 : i32
    %c0_i32_0 = arith.constant 0 : i32
    %c0_i32_1 = arith.constant 0 : i32
    return %c0_i32, %c0_i32_0 : i32, i32
  }
  func.func @transform_4(%arg0: i32) -> (i32, i32) {
    %c0_i32 = arith.constant 0 : i32
    %c0_i32_0 = arith.constant 0 : i32
    %c0_i32_1 = arith.constant 0 : i32
    return %c0_i32, %c0_i32_0 : i32, i32
  }
  func.func @transform_5(%arg0: i32) -> (i32, i32) {
    %c0_i32 = arith.constant 0 : i32
    %c0_i32_0 = arith.constant 0 : i32
    %c0_i32_1 = arith.constant 0 : i32
    return %c0_i32, %c0_i32_0 : i32, i32
  }
  func.func @transform_6(%arg0: i32) -> (i32, i32) {
    %c0_i32 = arith.constant 0 : i32
    %c0_i32_0 = arith.constant 0 : i32
    return %arg0, %c0_i32 : i32, i32
  }
  func.func @transform_7(%arg0: i32) -> (i32, i32) {
    %c0_i32 = arith.constant 0 : i32
    %c0_i32_0 = arith.constant 0 : i32
    return %arg0, %c0_i32 : i32, i32
  }
}

</mosaic_0001>

<llo_original>
// kernel: basic_block_forward.4
$region0: #{basic_block_forward.4}
  #allocation0 [shape = 'u32[]', space=smem, size = 0x4, offset = 0x4, fixed_abs, tag = 'smem constant byte address 0x4 - core index']
  #allocation1 [shape = 'u32[144,128]{1,0:T(1,128)}', space=vmem, size = 0x12000, scoped, tag = 'internal scratch']
  %s0 = inlined_call_operand.vmem [shape: f32[512,128], index: 0, kind: input, shape index: {}]
  %s1 = inlined_call_operand.vmem [shape: f32[128,128], index: 1, kind: input, shape index: {}]
  %s2 = inlined_call_operand.vmem [shape: f32[1,128], index: 2, kind: output, shape index: {0}]
  %s3 = inlined_call_operand.vmem [shape: f32[1,128], index: 3, kind: output, shape index: {1}]
  %4 = xla_tuple %s2, %s3
  %s5 = sld [smem:[#allocation0]]
  $region53: #{basic_block_forward.4} parent=0
    _
  %s7 = ssub.s32 1, %s5
  %s8 = scalar_select 0, %s7, %s5
  loop: start=0, step=1, limit=4
  $region2: #{basic_block_forward.4} parent=0 // loop_pre_header
    _
  $region3: #{basic_block_forward.4} parent=0 // loop_header
    %s10 = sphi 0, %s14
    %p11 = scmp.ge.s32.totalorder %s10, 4
    %s20 = sphi 0, %s22
    %s23 = sphi 0, %s20
    %s24 = sphi 0, %s23
    %s40 = sphi 0, %s24
    %s44 = sphi 0, %s44
    %s46 = sphi 0, %s44
    %s47 = sphi 0, %s46
    %s61 = sphi 0, %s47
    %s65 = sphi 0, %s65
    %s67 = sphi 0, %s65
    %s68 = sphi 0, %s67
    %s82 = sphi 0, %s68
    %s86 = sphi 0, %s86
    %s88 = sphi 0, %s86
    %s89 = sphi 0, %s88
    %s103 = sphi 0, %s89
  $region4: #{basic_block_forward.4} parent=0 // loop_header_branch
    %13 = sbr.rel (%p11) target = $region8
  $region5: #{basic_block_forward.4} parent=0 // loop_body
    %s15 = ssub.s32 %s10, 1
    %s16 = ssub.s32 %s10, 2
    %s17 = sadd.s32 %s10, 1
    %s18 = ssub.s32 %s10, %s17
    %p19 = scmp.eq.s32.totalorder %s18, 0
    %s21 = sadd.s32 %s20, 1
    %s22 = scalar_select %p19, %s20, %s21
    %p25 = pneg %p19
    %p26 = scmp.eq.s32.totalorder %s10, 1
    %p27 = por %p25, %p26
    %p28 = scmp.ne.s32.totalorder %s20, %s23
    %p29 = scmp.eq.s32.totalorder %s10, 0
    %p30 = por %p28, %p29
    %p31 = scmp.ne.s32.totalorder %s20, %s23
    %p32 = scmp.eq.s32.totalorder %s15, 1
    %p33 = por %p31, %p32
    %p34 = scmp.ne.s32.totalorder %s23, %s24
    %p35 = scmp.eq.s32.totalorder %s15, 0
    %p36 = por %p34, %p35
    %p37 = scmp.ne.s32.totalorder %s23, %s24
    %p38 = scmp.eq.s32.totalorder %s16, 1
    %p39 = por %p37, %p38
    %p41 = scmp.ne.s32.totalorder %s24, %s40
    %p42 = scmp.eq.s32.totalorder %s16, 0
    %p43 = por %p41, %p42
    %s45 = sadd.s32 %s44, 1
    %p48 = scmp.eq.s32.totalorder %s10, 1
    %p49 = scmp.ne.s32.totalorder %s44, %s46
    %p50 = scmp.eq.s32.totalorder %s10, 0
    %p51 = por %p49, %p50
    %p52 = scmp.ne.s32.totalorder %s44, %s46
    %p53 = scmp.eq.s32.totalorder %s15, 1
    %p54 = por %p52, %p53
    %p55 = scmp.ne.s32.totalorder %s46, %s47
    %p56 = scmp.eq.s32.totalorder %s15, 0
    %p57 = por %p55, %p56
    %p58 = scmp.ne.s32.totalorder %s46, %s47
    %p59 = scmp.eq.s32.totalorder %s16, 1
    %p60 = por %p58, %p59
    %p62 = scmp.ne.s32.totalorder %s47, %s61
    %p63 = scmp.eq.s32.totalorder %s16, 0
    %p64 = por %p62, %p63
    %s66 = sadd.s32 %s65, 1
    %p69 = scmp.eq.s32.totalorder %s10, 1
    %p70 = scmp.ne.s32.totalorder %s65, %s67
    %p71 = scmp.eq.s32.totalorder %s10, 0
    %p72 = por %p70, %p71
    %p73 = scmp.ne.s32.totalorder %s65, %s67
    %p74 = scmp.eq.s32.totalorder %s15, 1
    %p75 = por %p73, %p74
    %p76 = scmp.ne.s32.totalorder %s67, %s68
    %p77 = scmp.eq.s32.totalorder %s15, 0
    %p78 = por %p76, %p77
    %p79 = scmp.ne.s32.totalorder %s67, %s68
    %p80 = scmp.eq.s32.totalorder %s16, 1
    %p81 = por %p79, %p80
    %p83 = scmp.ne.s32.totalorder %s68, %s82
    %p84 = scmp.eq.s32.totalorder %s16, 0
    %p85 = por %p83, %p84
    %s87 = sadd.s32 %s86, 1
    %p90 = scmp.eq.s32.totalorder %s10, 1
    %p91 = scmp.ne.s32.totalorder %s86, %s88
    %p92 = scmp.eq.s32.totalorder %s10, 0
    %p93 = por %p91, %p92
    %p94 = scmp.ne.s32.totalorder %s86, %s88
    %p95 = scmp.eq.s32.totalorder %s15, 1
    %p96 = por %p94, %p95
    %p97 = scmp.ne.s32.totalorder %s88, %s89
    %p98 = scmp.eq.s32.totalorder %s15, 0
    %p99 = por %p97, %p98
    %p100 = scmp.ne.s32.totalorder %s88, %s89
    %p101 = scmp.eq.s32.totalorder %s16, 1
    %p102 = por %p100, %p101
    %p104 = scmp.ne.s32.totalorder %s89, %s103
    %p105 = scmp.eq.s32.totalorder %s16, 0
    %p106 = por %p104, %p105
    %p107 = scmp.le.s32.totalorder 1, %s10
    %p108 = scmp.lt.s32.totalorder %s10, 3
    %p109 = pnand %p107, %p108
    %p110 = pneg %p109
    // Predicated region
    $region9: #{basic_block_forward.4} parent=5 // pred_check
      _
    $region10: #{basic_block_forward.4} parent=5 // pred_check_branch
      %112 = sbr.rel (%p109) target = $region12
    $region11: #{basic_block_forward.4} parent=5 // pred_region
      %s113 = ssub.s32 %s10, 1
      // Predicated region
      $region13: #{basic_block_forward.4} parent=11 // pred_check
        %p114 = pneg %p57
      $region14: #{basic_block_forward.4} parent=11 // pred_check_branch
        %116 = sbr.rel (%p114) target = $region16
      $region15: #{basic_block_forward.4} parent=11 // pred_region
        _
      $region16: #{basic_block_forward.4} parent=11 // pred_fallthru
        _
    $region12: #{basic_block_forward.4} parent=5 // pred_fallthru
      _
    %p117 = scmp.lt.s32.totalorder %s10, 2
    // Predicated region
    $region17: #{basic_block_forward.4} parent=5 // pred_check
      %p118 = pneg %p117
    $region18: #{basic_block_forward.4} parent=5 // pred_check_branch
      %120 = sbr.rel (%p118) target = $region20
    $region19: #{basic_block_forward.4} parent=5 // pred_region
      // Predicated region
      $region21: #{basic_block_forward.4} parent=19 // pred_check
        %p121 = pneg %p30
      $region22: #{basic_block_forward.4} parent=19 // pred_check_branch
        %123 = sbr.rel (%p121) target = $region24
      $region23: #{basic_block_forward.4} parent=19 // pred_region
        %s124 = smul.u32 32, %s10
        %p125 = scmp.lt.s32.totalorder %s124, 63
        %s126 = scalar_select %p125, %s124, 63
        %s127 = smul.addr %s126, 8
        %s128 = scalar_lea.vmem %s0, %s127
        %s129 = smul.u32 32, %s10
      $region24: #{basic_block_forward.4} parent=19 // pred_fallthru
        _
    $region20: #{basic_block_forward.4} parent=5 // pred_fallthru
      _
    %p130 = scmp.le.s32.totalorder 1, %s10
    %p131 = scmp.lt.s32.totalorder %s10, 3
    %p132 = pnand %p130, %p131
    %p133 = pneg %p132
    // Predicated region
    $region25: #{basic_block_forward.4} parent=5 // pred_check
      _
    $region26: #{basic_block_forward.4} parent=5 // pred_check_branch
      %135 = sbr.rel (%p132) target = $region28
    $region27: #{basic_block_forward.4} parent=5 // pred_region
      %s136 = ssub.s32 %s10, 1
      %s137 = smul.u32 32, %s15
      %p138 = scmp.lt.s32.totalorder %s137, 63
      %s139 = scalar_select %p138, %s137, 63
      %s140 = smul.addr %s139, 8
      %s141 = scalar_lea.vmem %s0, %s140
      %p142 = pneg %p36
      %p143 = pneg %p33
      %p144 = pneg %p57
      %p145 = pneg %p54
      %p146 = pneg %p78
      %p147 = pneg %p75
      %p148 = pneg %p99
      %p149 = pneg %p96
      %s150 = smul.u32 32, %s15
      %p151 = scmp.lt.s32.totalorder %s150, 63
      %s152 = scalar_select %p151, %s150, 63
      %s153 = smul.addr %s152, 8
      %s154 = scalar_lea.vmem %s0, %s153
      %s155 = smul.u32 32, %s15
      %p156 = scmp.eq.s32.totalorder %s15, 0
      // Predicated region
      $region29: #{basic_block_forward.4} parent=27 // pred_check
        %p157 = pneg %p156
      $region30: #{basic_block_forward.4} parent=27 // pred_check_branch
        %159 = sbr.rel (%p157) target = $region32
      $region31: #{basic_block_forward.4} parent=27 // pred_region
        %160 = vst [vmem:[%s2] sm:$0x1] 0.0
        %161 = vst [vmem:[%s3] sm:$0x1] 0.0
      $region32: #{basic_block_forward.4} parent=27 // pred_fallthru
        _
      %v162 = vld [vmem:[%s154] sm:$0xff]
      %v163 = vld [vmem:[%s154 + $0x8] sm:$0xff]
      %v164 = vld [vmem:[%s154 + $0x10] sm:$0xff]
      %v165 = vld [vmem:[%s154 + $0x18] sm:$0xff]
      %v166 = vld [vmem:[%s154 + $0x20] sm:$0xff]
      %v167 = vld [vmem:[%s154 + $0x28] sm:$0xff]
      %v168 = vld [vmem:[%s154 + $0x30] sm:$0xff]
      %v169 = vld [vmem:[%s154 + $0x38] sm:$0xff]
      %v170 = vld [vmem:[%s154 + $0x40] sm:$0xff]
      %v171 = vld [vmem:[%s154 + $0x48] sm:$0xff]
      %v172 = vld [vmem:[%s154 + $0x50] sm:$0xff]
      %v173 = vld [vmem:[%s154 + $0x58] sm:$0xff]
      %v174 = vld [vmem:[%s154 + $0x60] sm:$0xff]
      %v175 = vld [vmem:[%s154 + $0x68] sm:$0xff]
      %v176 = vld [vmem:[%s154 + $0x70] sm:$0xff]
      %v177 = vld [vmem:[%s154 + $0x78] sm:$0xff]
      %v178 = vld [vmem:[%s154 + $0x80] sm:$0xff]
      %v179 = vld [vmem:[%s154 + $0x88] sm:$0xff]
      %v180 = vld [vmem:[%s154 + $0x90] sm:$0xff]
      %v181 = vld [vmem:[%s154 + $0x98] sm:$0xff]
      %v182 = vld [vmem:[%s154 + $0xa0] sm:$0xff]
      %v183 = vld [vmem:[%s154 + $0xa8] sm:$0xff]
      %v184 = vld [vmem:[%s154 + $0xb0] sm:$0xff]
      %v185 = vld [vmem:[%s154 + $0xb8] sm:$0xff]
      %v186 = vld [vmem:[%s154 + $0xc0] sm:$0xff]
      %v187 = vld [vmem:[%s154 + $0xc8] sm:$0xff]
      %v188 = vld [vmem:[%s154 + $0xd0] sm:$0xff]
      %v189 = vld [vmem:[%s154 + $0xd8] sm:$0xff]
      %v190 = vld [vmem:[%s154 + $0xe0] sm:$0xff]
      %v191 = vld [vmem:[%s154 + $0xe8] sm:$0xff]
      %v192 = vld [vmem:[%s154 + $0xf0] sm:$0xff]
      %v193 = vld [vmem:[%s154 + $0xf8] sm:$0xff]
      %v194 = vld [vmem:[%s1] sm:$0xff]
      %v195 = vld [vmem:[%s1 + $0x8] sm:$0xff]
      %v196 = vld [vmem:[%s1 + $0x10] sm:$0xff]
      %v197 = vld [vmem:[%s1 + $0x18] sm:$0xff]
      %v198 = vld [vmem:[%s1 + $0x20] sm:$0xff]
      %v199 = vld [vmem:[%s1 + $0x28] sm:$0xff]
      %v200 = vld [vmem:[%s1 + $0x30] sm:$0xff]
      %v201 = vld [vmem:[%s1 + $0x38] sm:$0xff]
      %v202 = vld [vmem:[%s1 + $0x40] sm:$0xff]
      %v203 = vld [vmem:[%s1 + $0x48] sm:$0xff]
      %v204 = vld [vmem:[%s1 + $0x50] sm:$0xff]
      %v205 = vld [vmem:[%s1 + $0x58] sm:$0xff]
      %v206 = vld [vmem:[%s1 + $0x60] sm:$0xff]
      %v207 = vld [vmem:[%s1 + $0x68] sm:$0xff]
      %v208 = vld [vmem:[%s1 + $0x70] sm:$0xff]
      %v209 = vld [vmem:[%s1 + $0x78] sm:$0xff]
      %210 = vmatprep.subr.mxu0 0.0
      %211 = vmatpush1.msra.mxu0 %v194
      %212 = vmatprep.subr.mxu0 0.0
      %213 = vmatpush1.msra.mxu0 %v195
      %214 = vmatprep.subr.mxu0 0.0
      %215 = vmatpush1.msra.mxu0 %v196
      %216 = vmatprep.subr.mxu0 0.0
      %217 = vmatpush1.msra.mxu0 %v197
      %218 = vmatprep.subr.mxu0 0.0
      %219 = vmatpush1.msra.mxu0 %v198
      %220 = vmatprep.subr.mxu0 0.0
      %221 = vmatpush1.msra.mxu0 %v199
      %222 = vmatprep.subr.mxu0 0.0
      %223 = vmatpush1.msra.mxu0 %v200
      %224 = vmatprep.subr.mxu0 0.0
      %225 = vmatpush1.msra.mxu0 %v201
      %226 = vmatprep.subr.mxu0 0.0
      %227 = vmatpush1.msra.mxu0 %v202
      %228 = vmatprep.subr.mxu0 0.0
      %229 = vmatpush1.msra.mxu0 %v203
      %230 = vmatprep.subr.mxu0 0.0
      %231 = vmatpush1.msra.mxu0 %v204
      %232 = vmatprep.subr.mxu0 0.0
      %233 = vmatpush1.msra.mxu0 %v205
      %234 = vmatprep.subr.mxu0 0.0
      %235 = vmatpush1.msra.mxu0 %v206
      %236 = vmatprep.subr.mxu0 0.0
      %237 = vmatpush1.msra.mxu0 %v207
      %238 = vmatprep.subr.mxu0 0.0
      %239 = vmatpush1.msra.mxu0 %v208
      %240 = vmatprep.subr.mxu0 0.0
      %241 = vmatpush1.msra.mxu0 %v209
      %242 = vmatprep.subr.mxu0 0.0
      %243 = vmatpush1.msra.mxu0 0.0
      %244 = vmatprep.subr.mxu0 0.0
      %245 = vmatpush1.msra.mxu0 0.0
      %246 = vmatprep.subr.mxu0 0.0
      %247 = vmatpush1.msra.mxu0 0.0
      %248 = vmatprep.subr.mxu0 0.0
      %249 = vmatpush1.msra.mxu0 0.0
      %250 = vmatprep.subr.mxu0 0.0
      %251 = vmatpush1.msra.mxu0 0.0
      %252 = vmatprep.subr.mxu0 0.0
      %253 = vmatpush1.msra.mxu0 0.0
      %254 = vmatprep.subr.mxu0 0.0
      %255 = vmatpush1.msra.mxu0 0.0
      %256 = vmatprep.subr.mxu0 0.0
      %257 = vmatpush1.msra.mxu0 0.0
      %258 = vmatprep.subr.mxu0 0.0
      %259 = vmatpush1.msra.mxu0 0.0
      %260 = vmatprep.subr.mxu0 0.0
      %261 = vmatpush1.msra.mxu0 0.0
      %262 = vmatprep.subr.mxu0 0.0
      %263 = vmatpush1.msra.mxu0 0.0
      %264 = vmatprep.subr.mxu0 0.0
      %265 = vmatpush1.msra.mxu0 0.0
      %266 = vmatprep.subr.mxu0 0.0
      %267 = vmatpush1.msra.mxu0 0.0
      %268 = vmatprep.subr.mxu0 0.0
      %269 = vmatpush1.msra.mxu0 0.0
      %270 = vmatprep.subr.mxu0 0.0
      %271 = vmatpush1.msra.mxu0 0.0
      %272 = vmatprep.subr.mxu0 0.0
      %273 = vmatpush1.msra.mxu0 0.0
      %274 = vmatprep.mubr.f32.mxu0 0.0
      %275 = vmatmul.mubr.f32.gmra.mrb[0].mxu0 %v162
      %v276 = vpop.f32.mrb[0].mxu0
      %v277 = vadd.f32 0.0, %v276
      %v278 = vpop.f32.mrb[0].mxu0
      %279 = vmatprep.mubr.f32.mxu0 0.0
      %280 = vmatmul.mubr.f32.gmra.mrb[0].mxu0 %v163
      %v281 = vpop.f32.mrb[0].mxu0
      %v282 = vadd.f32 0.0, %v281
      %v283 = vpop.f32.mrb[0].mxu0
      %284 = vmatprep.mubr.f32.mxu0 0.0
      %285 = vmatmul.mubr.f32.gmra.mrb[0].mxu0 %v164
      %v286 = vpop.f32.mrb[0].mxu0
      %v287 = vadd.f32 0.0, %v286
      %v288 = vpop.f32.mrb[0].mxu0
      %289 = vmatprep.mubr.f32.mxu0 0.0
      %290 = vmatmul.mubr.f32.gmra.mrb[0].mxu0 %v165
      %v291 = vpop.f32.mrb[0].mxu0
      %v292 = vadd.f32 0.0, %v291
      %v293 = vpop.f32.mrb[0].mxu0
      %294 = vmatprep.mubr.f32.mxu0 0.0
      %295 = vmatmul.mubr.f32.gmra.mrb[0].mxu0 %v166
      %v296 = vpop.f32.mrb[0].mxu0
      %v297 = vadd.f32 0.0, %v296
      %v298 = vpop.f32.mrb[0].mxu0
      %299 = vmatprep.mubr.f32.mxu0 0.0
      %300 = vmatmul.mubr.f32.gmra.mrb[0].mxu0 %v167
      %v301 = vpop.f32.mrb[0].mxu0
      %v302 = vadd.f32 0.0, %v301
      %v303 = vpop.f32.mrb[0].mxu0
      %304 = vmatprep.mubr.f32.mxu0 0.0
      %305 = vmatmul.mubr.f32.gmra.mrb[0].mxu0 %v168
      %v306 = vpop.f32.mrb[0].mxu0
      %v307 = vadd.f32 0.0, %v306
      %v308 = vpop.f32.mrb[0].mxu0
      %309 = vmatprep.mubr.f32.mxu0 0.0
      %310 = vmatmul.mubr.f32.gmra.mrb[0].mxu0 %v169
      %v311 = vpop.f32.mrb[0].mxu0
      %v312 = vadd.f32 0.0, %v311
      %v313 = vpop.f32.mrb[0].mxu0
      %314 = vmatprep.mubr.f32.mxu0 0.0
      %315 = vmatmul.mubr.f32.gmra.mrb[0].mxu0 %v170
      %v316 = vpop.f32.mrb[0].mxu0
      %v317 = vadd.f32 0.0, %v316
      %v318 = vpop.f32.mrb[0].mxu0
      %319 = vmatprep.mubr.f32.mxu0 0.0
      %320 = vmatmul.mubr.f32.gmra.mrb[0].mxu0 %v171
      %v321 = vpop.f32.mrb[0].mxu0
      %v322 = vadd.f32 0.0, %v321
      %v323 = vpop.f32.mrb[0].mxu0
      %324 = vmatprep.mubr.f32.mxu0 0.0
      %325 = vmatmul.mubr.f32.gmra.mrb[0].mxu0 %v172
      %v326 = vpop.f32.mrb[0].mxu0
      %v327 = vadd.f32 0.0, %v326
      %v328 = vpop.f32.mrb[0].mxu0
      %329 = vmatprep.mubr.f32.mxu0 0.0
      %330 = vmatmul.mubr.f32.gmra.mrb[0].mxu0 %v173
      %v331 = vpop.f32.mrb[0].mxu0
      %v332 = vadd.f32 0.0, %v331
      %v333 = vpop.f32.mrb[0].mxu0
      %334 = vmatprep.mubr.f32.mxu0 0.0
      %335 = vmatmul.mubr.f32.gmra.mrb[0].mxu0 %v174
      %v336 = vpop.f32.mrb[0].mxu0
      %v337 = vadd.f32 0.0, %v336
      %v338 = vpop.f32.mrb[0].mxu0
      %339 = vmatprep.mubr.f32.mxu0 0.0
      %340 = vmatmul.mubr.f32.gmra.mrb[0].mxu0 %v175
      %v341 = vpop.f32.mrb[0].mxu0
      %v342 = vadd.f32 0.0, %v341
      %v343 = vpop.f32.mrb[0].mxu0
      %344 = vmatprep.mubr.f32.mxu0 0.0
      %345 = vmatmul.mubr.f32.gmra.mrb[0].mxu0 %v176
      %v346 = vpop.f32.mrb[0].mxu0
      %v347 = vadd.f32 0.0, %v346
      %v348 = vpop.f32.mrb[0].mxu0
      %349 = vmatprep.mubr.f32.mxu0 0.0
      %350 = vmatmul.mubr.f32.gmra.mrb[0].mxu0 %v177
      %v351 = vpop.f32.mrb[0].mxu0
      %v352 = vadd.f32 0.0, %v351
      %v353 = vpop.f32.mrb[0].mxu0
      %354 = vmatprep.mubr.f32.mxu0 0.0
      %355 = vmatmul.mubr.f32.gmra.mrb[0].mxu0 %v178
      %v356 = vpop.f32.mrb[0].mxu0
      %v357 = vadd.f32 0.0, %v356
      %v358 = vpop.f32.mrb[0].mxu0
      %359 = vmatprep.mubr.f32.mxu0 0.0
      %360 = vmatmul.mubr.f32.gmra.mrb[0].mxu0 %v179
      %v361 = vpop.f32.mrb[0].mxu0
      %v362 = vadd.f32 0.0, %v361
      %v363 = vpop.f32.mrb[0].mxu0
      %364 = vmatprep.mubr.f32.mxu0 0.0
      %365 = vmatmul.mubr.f32.gmra.mrb[0].mxu0 %v180
      %v366 = vpop.f32.mrb[0].mxu0
      %v367 = vadd.f32 0.0, %v366
      %v368 = vpop.f32.mrb[0].mxu0
      %369 = vmatprep.mubr.f32.mxu0 0.0
      %370 = vmatmul.mubr.f32.gmra.mrb[0].mxu0 %v181
      %v371 = vpop.f32.mrb[0].mxu0
      %v372 = vadd.f32 0.0, %v371
      %v373 = vpop.f32.mrb[0].mxu0
      %374 = vmatprep.mubr.f32.mxu0 0.0
      %375 = vmatmul.mubr.f32.gmra.mrb[0].mxu0 %v182
      %v376 = vpop.f32.mrb[0].mxu0
      %v377 = vadd.f32 0.0, %v376
      %v378 = vpop.f32.mrb[0].mxu0
      %379 = vmatprep.mubr.f32.mxu0 0.0
      %380 = vmatmul.mubr.f32.gmra.mrb[0].mxu0 %v183
      %v381 = vpop.f32.mrb[0].mxu0
      %v382 = vadd.f32 0.0, %v381
      %v383 = vpop.f32.mrb[0].mxu0
      %384 = vmatprep.mubr.f32.mxu0 0.0
      %385 = vmatmul.mubr.f32.gmra.mrb[0].mxu0 %v184
      %v386 = vpop.f32.mrb[0].mxu0
      %v387 = vadd.f32 0.0, %v386
      %v388 = vpop.f32.mrb[0].mxu0
      %389 = vmatprep.mubr.f32.mxu0 0.0
      %390 = vmatmul.mubr.f32.gmra.mrb[0].mxu0 %v185
      %v391 = vpop.f32.mrb[0].mxu0
      %v392 = vadd.f32 0.0, %v391
      %v393 = vpop.f32.mrb[0].mxu0
      %394 = vmatprep.mubr.f32.mxu0 0.0
      %395 = vmatmul.mubr.f32.gmra.mrb[0].mxu0 %v186
      %v396 = vpop.f32.mrb[0].mxu0
      %v397 = vadd.f32 0.0, %v396
      %v398 = vpop.f32.mrb[0].mxu0
      %399 = vmatprep.mubr.f32.mxu0 0.0
      %400 = vmatmul.mubr.f32.gmra.mrb[0].mxu0 %v187
      %v401 = vpop.f32.mrb[0].mxu0
      %v402 = vadd.f32 0.0, %v401
      %v403 = vpop.f32.mrb[0].mxu0
      %404 = vmatprep.mubr.f32.mxu0 0.0
      %405 = vmatmul.mubr.f32.gmra.mrb[0].mxu0 %v188
      %v406 = vpop.f32.mrb[0].mxu0
      %v407 = vadd.f32 0.0, %v406
      %v408 = vpop.f32.mrb[0].mxu0
      %409 = vmatprep.mubr.f32.mxu0 0.0
      %410 = vmatmul.mubr.f32.gmra.mrb[0].mxu0 %v189
      %v411 = vpop.f32.mrb[0].mxu0
      %v412 = vadd.f32 0.0, %v411
      %v413 = vpop.f32.mrb[0].mxu0
      %414 = vmatprep.mubr.f32.mxu0 0.0
      %415 = vmatmul.mubr.f32.gmra.mrb[0].mxu0 %v190
      %v416 = vpop.f32.mrb[0].mxu0
      %v417 = vadd.f32 0.0, %v416
      %v418 = vpop.f32.mrb[0].mxu0
      %419 = vmatprep.mubr.f32.mxu0 0.0
      %420 = vmatmul.mubr.f32.gmra.mrb[0].mxu0 %v191
      %v421 = vpop.f32.mrb[0].mxu0
      %v422 = vadd.f32 0.0, %v421
      %v423 = vpop.f32.mrb[0].mxu0
      %424 = vmatprep.mubr.f32.mxu0 0.0
      %425 = vmatmul.mubr.f32.gmra.mrb[0].mxu0 %v192
      %v426 = vpop.f32.mrb[0].mxu0
      %v427 = vadd.f32 0.0, %v426
      %v428 = vpop.f32.mrb[0].mxu0
      %429 = vmatprep.mubr.f32.mxu0 0.0
      %430 = vmatmul.mubr.f32.gmra.mrb[0].mxu0 %v193
      %v431 = vpop.f32.mrb[0].mxu0
      %v432 = vadd.f32 0.0, %v431
      %v433 = vpop.f32.mrb[0].mxu0
      %434 = vdwg.mxu0
      %v435 = vld [vmem:[%s2] sm:$0x1]
      %v436 = vadd.f32 %v277, %v282
      %v437 = vadd.f32 %v436, %v287
      %v438 = vadd.f32 %v437, %v292
      %v439 = vadd.f32 %v438, %v297
      %v440 = vadd.f32 %v439, %v302
      %v441 = vadd.f32 %v440, %v307
      %v442 = vadd.f32 %v441, %v312
      %v443 = vadd.f32 %v442, %v317
      %v444 = vadd.f32 %v443, %v322
      %v445 = vadd.f32 %v444, %v327
      %v446 = vadd.f32 %v445, %v332
      %v447 = vadd.f32 %v446, %v337
      %v448 = vadd.f32 %v447, %v342
      %v449 = vadd.f32 %v448, %v347
      %v450 = vadd.f32 %v449, %v352
      %v451 = vadd.f32 %v450, %v357
      %v452 = vadd.f32 %v451, %v362
      %v453 = vadd.f32 %v452, %v367
      %v454 = vadd.f32 %v453, %v372
      %v455 = vadd.f32 %v454, %v377
      %v456 = vadd.f32 %v455, %v382
      %v457 = vadd.f32 %v456, %v387
      %v458 = vadd.f32 %v457, %v392
      %v459 = vadd.f32 %v458, %v397
      %v460 = vadd.f32 %v459, %v402
      %v461 = vadd.f32 %v460, %v407
      %v462 = vadd.f32 %v461, %v412
      %v463 = vadd.f32 %v462, %v417
      %v464 = vadd.f32 %v463, %v422
      %v465 = vadd.f32 %v464, %v427
      %v466 = vadd.f32 %v465, %v432
      %v467 = vrot.slane %v466, 4
      %v468 = vadd.f32 %v466, %v467
      %v469 = vrot.slane %v468, 2
      %v470 = vadd.f32 %v468, %v469
      %v471 = vrot.slane %v470, 1
      %v472 = vadd.f32 %v470, %v471
      %v473 = vadd.f32 %v435, %v472
      %474 = vst [vmem:[%s2] sm:$0x1] %v473
      %v475 = vld [vmem:[%s3] sm:$0x1]
      %v476 = vmul.f32 %v277, %v277
      %v477 = vmul.f32 %v282, %v282
      %v478 = vmul.f32 %v287, %v287
      %v479 = vmul.f32 %v292, %v292
      %v480 = vmul.f32 %v297, %v297
      %v481 = vmul.f32 %v302, %v302
      %v482 = vmul.f32 %v307, %v307
      %v483 = vmul.f32 %v312, %v312
      %v484 = vmul.f32 %v317, %v317
      %v485 = vmul.f32 %v322, %v322
      %v486 = vmul.f32 %v327, %v327
      %v487 = vmul.f32 %v332, %v332
      %v488 = vmul.f32 %v337, %v337
      %v489 = vmul.f32 %v342, %v342
      %v490 = vmul.f32 %v347, %v347
      %v491 = vmul.f32 %v352, %v352
      %v492 = vmul.f32 %v357, %v357
      %v493 = vmul.f32 %v362, %v362
      %v494 = vmul.f32 %v367, %v367
      %v495 = vmul.f32 %v372, %v372
      %v496 = vmul.f32 %v377, %v377
      %v497 = vmul.f32 %v382, %v382
      %v498 = vmul.f32 %v387, %v387
      %v499 = vmul.f32 %v392, %v392
      %v500 = vmul.f32 %v397, %v397
      %v501 = vmul.f32 %v402, %v402
      %v502 = vmul.f32 %v407, %v407
      %v503 = vmul.f32 %v412, %v412
      %v504 = vmul.f32 %v417, %v417
      %v505 = vmul.f32 %v422, %v422
      %v506 = vmul.f32 %v427, %v427
      %v507 = vmul.f32 %v432, %v432
      %v508 = vadd.f32 %v476, %v477
      %v509 = vadd.f32 %v508, %v478
      %v510 = vadd.f32 %v509, %v479
      %v511 = vadd.f32 %v510, %v480
      %v512 = vadd.f32 %v511, %v481
      %v513 = vadd.f32 %v512, %v482
      %v514 = vadd.f32 %v513, %v483
      %v515 = vadd.f32 %v514, %v484
      %v516 = vadd.f32 %v515, %v485
      %v517 = vadd.f32 %v516, %v486
      %v518 = vadd.f32 %v517, %v487
      %v519 = vadd.f32 %v518, %v488
      %v520 = vadd.f32 %v519, %v489
      %v521 = vadd.f32 %v520, %v490
      %v522 = vadd.f32 %v521, %v491
      %v523 = vadd.f32 %v522, %v492
      %v524 = vadd.f32 %v523, %v493
      %v525 = vadd.f32 %v524, %v494
      %v526 = vadd.f32 %v525, %v495
      %v527 = vadd.f32 %v526, %v496
      %v528 = vadd.f32 %v527, %v497
      %v529 = vadd.f32 %v528, %v498
      %v530 = vadd.f32 %v529, %v499
      %v531 = vadd.f32 %v530, %v500
      %v532 = vadd.f32 %v531, %v501
      %v533 = vadd.f32 %v532, %v502
      %v534 = vadd.f32 %v533, %v503
      %v535 = vadd.f32 %v534, %v504
      %v536 = vadd.f32 %v535, %v505
      %v537 = vadd.f32 %v536, %v506
      %v538 = vadd.f32 %v537, %v507
      %v539 = vrot.slane %v538, 4
      %v540 = vadd.f32 %v538, %v539
      %v541 = vrot.slane %v540, 2
      %v542 = vadd.f32 %v540, %v541
      %v543 = vrot.slane %v542, 1
      %v544 = vadd.f32 %v542, %v543
      %v545 = vadd.f32 %v475, %v544
      %546 = vst [vmem:[%s3] sm:$0x1] %v545
      // Predicated region
      $region33: #{basic_block_forward.4} parent=27 // pred_check
        %p547 = pneg %p75
      $region34: #{basic_block_forward.4} parent=27 // pred_check_branch
        %549 = sbr.rel (%p547) target = $region36
      $region35: #{basic_block_forward.4} parent=27 // pred_region
        _
      $region36: #{basic_block_forward.4} parent=27 // pred_fallthru
        _
      // Predicated region
      $region37: #{basic_block_forward.4} parent=27 // pred_check
        %p550 = pneg %p96
      $region38: #{basic_block_forward.4} parent=27 // pred_check_branch
        %552 = sbr.rel (%p550) target = $region40
      $region39: #{basic_block_forward.4} parent=27 // pred_region
        _
      $region40: #{basic_block_forward.4} parent=27 // pred_fallthru
        _
      // Predicated region
      $region41: #{basic_block_forward.4} parent=27 // pred_check
        %p553 = pneg %p75
      $region42: #{basic_block_forward.4} parent=27 // pred_check_branch
        %555 = sbr.rel (%p553) target = $region44
      $region43: #{basic_block_forward.4} parent=27 // pred_region
        _
      $region44: #{basic_block_forward.4} parent=27 // pred_fallthru
        _
      // Predicated region
      $region45: #{basic_block_forward.4} parent=27 // pred_check
        %p556 = pneg %p96
      $region46: #{basic_block_forward.4} parent=27 // pred_check_branch
        %558 = sbr.rel (%p556) target = $region48
      $region47: #{basic_block_forward.4} parent=27 // pred_region
        _
      $region48: #{basic_block_forward.4} parent=27 // pred_fallthru
        _
    $region28: #{basic_block_forward.4} parent=5 // pred_fallthru
      _
    %p559 = scmp.le.s32.totalorder 2, %s10
    // Predicated region
    $region49: #{basic_block_forward.4} parent=5 // pred_check
      %p560 = pneg %p559
    $region50: #{basic_block_forward.4} parent=5 // pred_check_branch
      %562 = sbr.rel (%p560) target = $region52
    $region51: #{basic_block_forward.4} parent=5 // pred_region
      %s563 = ssub.s32 %s10, 2
    $region52: #{basic_block_forward.4} parent=5 // pred_fallthru
      _
  $region6: #{basic_block_forward.4} parent=0 // loop_footer
    %s14 = sadd.s32 1, %s10
  $region7: #{basic_block_forward.4} parent=0 // loop_footer_branch
    %9 = sbr.rel target = $region3
  $region8: #{basic_block_forward.4} parent=0 // loop_exit
    _

// kernel: basic_block_forward.5
$region0: #{basic_block_forward.5}
  #allocation0 [shape = 'u32[]', space=smem, size = 0x4, offset = 0x4, fixed_abs, tag = 'smem constant byte address 0x4 - core index']
  #allocation1 [shape = 'u32[144,128]{1,0:T(1,128)}', space=vmem, size = 0x12000, scoped, tag = 'internal scratch']
  %s0 = inlined_call_operand.vmem [shape: f32[512,128], index: 0, kind: input, shape index: {}]
  %s1 = inlined_call_operand.vmem [shape: f32[128,128], index: 1, kind: input, shape index: {}]
  %s2 = inlined_call_operand.vmem [shape: f32[1,128], index: 2, kind: input, shape index: {}]
  %s3 = inlined_call_operand.vmem [shape: f32[1,128], index: 3, kind: input, shape index: {}]
  %s4 = inlined_call_operand.vmem [shape: f32[1,128], index: 4, kind: input, shape index: {}]
  %s5 = inlined_call_operand.vmem [shape: f32[1,128], index: 5, kind: input, shape index: {}]
  %s6 = inlined_call_operand.vmem [shape: f32[512,128], index: 6, kind: output, shape index: {}]
  %s7 = sld [smem:[#allocation0]]
  $region57: #{basic_block_forward.5} parent=0
    _
  %s9 = ssub.s32 1, %s7
  %s10 = scalar_select 0, %s9, %s7
  loop: start=0, step=1, limit=4
  $region2: #{basic_block_forward.5} parent=0 // loop_pre_header
    _
  $region3: #{basic_block_forward.5} parent=0 // loop_header
    %s12 = sphi 0, %s16
    %p13 = scmp.ge.s32.totalorder %s12, 4
    %s22 = sphi 0, %s24
    %s25 = sphi 0, %s22
    %s26 = sphi 0, %s25
    %s42 = sphi 0, %s26
    %s46 = sphi 0, %s46
    %s48 = sphi 0, %s46
    %s49 = sphi 0, %s48
    %s63 = sphi 0, %s49
    %s67 = sphi 0, %s67
    %s69 = sphi 0, %s67
    %s70 = sphi 0, %s69
    %s84 = sphi 0, %s70
    %s88 = sphi 0, %s88
    %s90 = sphi 0, %s88
    %s91 = sphi 0, %s90
    %s105 = sphi 0, %s91
    %s109 = sphi 0, %s109
    %s111 = sphi 0, %s109
    %s112 = sphi 0, %s111
    %s126 = sphi 0, %s112
    %s130 = sphi 0, %s130
    %s132 = sphi 0, %s130
    %s133 = sphi 0, %s132
    %s147 = sphi 0, %s133
    %s153 = sphi 0, %s155
    %s156 = sphi 0, %s153
    %s157 = sphi 0, %s156
    %s173 = sphi 0, %s157
  $region4: #{basic_block_forward.5} parent=0 // loop_header_branch
    %15 = sbr.rel (%p13) target = $region8
  $region5: #{basic_block_forward.5} parent=0 // loop_body
    %s17 = ssub.s32 %s12, 1
    %s18 = ssub.s32 %s12, 2
    %s19 = sadd.s32 %s12, 1
    %s20 = ssub.s32 %s12, %s19
    %p21 = scmp.eq.s32.totalorder %s20, 0
    %s23 = sadd.s32 %s22, 1
    %s24 = scalar_select %p21, %s22, %s23
    %p27 = pneg %p21
    %p28 = scmp.eq.s32.totalorder %s12, 1
    %p29 = por %p27, %p28
    %p30 = scmp.ne.s32.totalorder %s22, %s25
    %p31 = scmp.eq.s32.totalorder %s12, 0
    %p32 = por %p30, %p31
    %p33 = scmp.ne.s32.totalorder %s22, %s25
    %p34 = scmp.eq.s32.totalorder %s17, 1
    %p35 = por %p33, %p34
    %p36 = scmp.ne.s32.totalorder %s25, %s26
    %p37 = scmp.eq.s32.totalorder %s17, 0
    %p38 = por %p36, %p37
    %p39 = scmp.ne.s32.totalorder %s25, %s26
    %p40 = scmp.eq.s32.totalorder %s18, 1
    %p41 = por %p39, %p40
    %p43 = scmp.ne.s32.totalorder %s26, %s42
    %p44 = scmp.eq.s32.totalorder %s18, 0
    %p45 = por %p43, %p44
    %s47 = sadd.s32 %s46, 1
    %p50 = scmp.eq.s32.totalorder %s12, 1
    %p51 = scmp.ne.s32.totalorder %s46, %s48
    %p52 = scmp.eq.s32.totalorder %s12, 0
    %p53 = por %p51, %p52
    %p54 = scmp.ne.s32.totalorder %s46, %s48
    %p55 = scmp.eq.s32.totalorder %s17, 1
    %p56 = por %p54, %p55
    %p57 = scmp.ne.s32.totalorder %s48, %s49
    %p58 = scmp.eq.s32.totalorder %s17, 0
    %p59 = por %p57, %p58
    %p60 = scmp.ne.s32.totalorder %s48, %s49
    %p61 = scmp.eq.s32.totalorder %s18, 1
    %p62 = por %p60, %p61
    %p64 = scmp.ne.s32.totalorder %s49, %s63
    %p65 = scmp.eq.s32.totalorder %s18, 0
    %p66 = por %p64, %p65
    %s68 = sadd.s32 %s67, 1
    %p71 = scmp.eq.s32.totalorder %s12, 1
    %p72 = scmp.ne.s32.totalorder %s67, %s69
    %p73 = scmp.eq.s32.totalorder %s12, 0
    %p74 = por %p72, %p73
    %p75 = scmp.ne.s32.totalorder %s67, %s69
    %p76 = scmp.eq.s32.totalorder %s17, 1
    %p77 = por %p75, %p76
    %p78 = scmp.ne.s32.totalorder %s69, %s70
    %p79 = scmp.eq.s32.totalorder %s17, 0
    %p80 = por %p78, %p79
    %p81 = scmp.ne.s32.totalorder %s69, %s70
    %p82 = scmp.eq.s32.totalorder %s18, 1
    %p83 = por %p81, %p82
    %p85 = scmp.ne.s32.totalorder %s70, %s84
    %p86 = scmp.eq.s32.totalorder %s18, 0
    %p87 = por %p85, %p86
    %s89 = sadd.s32 %s88, 1
    %p92 = scmp.eq.s32.totalorder %s12, 1
    %p93 = scmp.ne.s32.totalorder %s88, %s90
    %p94 = scmp.eq.s32.totalorder %s12, 0
    %p95 = por %p93, %p94
    %p96 = scmp.ne.s32.totalorder %s88, %s90
    %p97 = scmp.eq.s32.totalorder %s17, 1
    %p98 = por %p96, %p97
    %p99 = scmp.ne.s32.totalorder %s90, %s91
    %p100 = scmp.eq.s32.totalorder %s17, 0
    %p101 = por %p99, %p100
    %p102 = scmp.ne.s32.totalorder %s90, %s91
    %p103 = scmp.eq.s32.totalorder %s18, 1
    %p104 = por %p102, %p103
    %p106 = scmp.ne.s32.totalorder %s91, %s105
    %p107 = scmp.eq.s32.totalorder %s18, 0
    %p108 = por %p106, %p107
    %s110 = sadd.s32 %s109, 1
    %p113 = scmp.eq.s32.totalorder %s12, 1
    %p114 = scmp.ne.s32.totalorder %s109, %s111
    %p115 = scmp.eq.s32.totalorder %s12, 0
    %p116 = por %p114, %p115
    %p117 = scmp.ne.s32.totalorder %s109, %s111
    %p118 = scmp.eq.s32.totalorder %s17, 1
    %p119 = por %p117, %p118
    %p120 = scmp.ne.s32.totalorder %s111, %s112
    %p121 = scmp.eq.s32.totalorder %s17, 0
    %p122 = por %p120, %p121
    %p123 = scmp.ne.s32.totalorder %s111, %s112
    %p124 = scmp.eq.s32.totalorder %s18, 1
    %p125 = por %p123, %p124
    %p127 = scmp.ne.s32.totalorder %s112, %s126
    %p128 = scmp.eq.s32.totalorder %s18, 0
    %p129 = por %p127, %p128
    %s131 = sadd.s32 %s130, 1
    %p134 = scmp.eq.s32.totalorder %s12, 1
    %p135 = scmp.ne.s32.totalorder %s130, %s132
    %p136 = scmp.eq.s32.totalorder %s12, 0
    %p137 = por %p135, %p136
    %p138 = scmp.ne.s32.totalorder %s130, %s132
    %p139 = scmp.eq.s32.totalorder %s17, 1
    %p140 = por %p138, %p139
    %p141 = scmp.ne.s32.totalorder %s132, %s133
    %p142 = scmp.eq.s32.totalorder %s17, 0
    %p143 = por %p141, %p142
    %p144 = scmp.ne.s32.totalorder %s132, %s133
    %p145 = scmp.eq.s32.totalorder %s18, 1
    %p146 = por %p144, %p145
    %p148 = scmp.ne.s32.totalorder %s133, %s147
    %p149 = scmp.eq.s32.totalorder %s18, 0
    %p150 = por %p148, %p149
    %s151 = ssub.s32 %s12, %s19
    %p152 = scmp.eq.s32.totalorder %s151, 0
    %s154 = sadd.s32 %s153, 1
    %s155 = scalar_select %p152, %s153, %s154
    %p158 = pneg %p152
    %p159 = scmp.eq.s32.totalorder %s12, 1
    %p160 = por %p158, %p159
    %p161 = scmp.ne.s32.totalorder %s153, %s156
    %p162 = scmp.eq.s32.totalorder %s12, 0
    %p163 = por %p161, %p162
    %p164 = scmp.ne.s32.totalorder %s153, %s156
    %p165 = scmp.eq.s32.totalorder %s17, 1
    %p166 = por %p164, %p165
    %p167 = scmp.ne.s32.totalorder %s156, %s157
    %p168 = scmp.eq.s32.totalorder %s17, 0
    %p169 = por %p167, %p168
    %p170 = scmp.ne.s32.totalorder %s156, %s157
    %p171 = scmp.eq.s32.totalorder %s18, 1
    %p172 = por %p170, %p171
    %p174 = scmp.ne.s32.totalorder %s157, %s173
    %p175 = scmp.eq.s32.totalorder %s18, 0
    %p176 = por %p174, %p175
    %p177 = scmp.le.s32.totalorder 1, %s12
    %p178 = scmp.lt.s32.totalorder %s12, 3
    %p179 = pnand %p177, %p178
    %p180 = pneg %p179
    // Predicated region
    $region9: #{basic_block_forward.5} parent=5 // pred_check
      _
    $region10: #{basic_block_forward.5} parent=5 // pred_check_branch
      %182 = sbr.rel (%p179) target = $region12
    $region11: #{basic_block_forward.5} parent=5 // pred_region
      %s183 = ssub.s32 %s12, 1
      // Predicated region
      $region13: #{basic_block_forward.5} parent=11 // pred_check
        %p184 = pneg %p59
      $region14: #{basic_block_forward.5} parent=11 // pred_check_branch
        %186 = sbr.rel (%p184) target = $region16
      $region15: #{basic_block_forward.5} parent=11 // pred_region
        _
      $region16: #{basic_block_forward.5} parent=11 // pred_fallthru
        _
      // Predicated region
      $region17: #{basic_block_forward.5} parent=11 // pred_check
        %p187 = pneg %p80
      $region18: #{basic_block_forward.5} parent=11 // pred_check_branch
        %189 = sbr.rel (%p187) target = $region20
      $region19: #{basic_block_forward.5} parent=11 // pred_region
        _
      $region20: #{basic_block_forward.5} parent=11 // pred_fallthru
        _
      // Predicated region
      $region21: #{basic_block_forward.5} parent=11 // pred_check
        %p190 = pneg %p101
      $region22: #{basic_block_forward.5} parent=11 // pred_check_branch
        %192 = sbr.rel (%p190) target = $region24
      $region23: #{basic_block_forward.5} parent=11 // pred_region
        _
      $region24: #{basic_block_forward.5} parent=11 // pred_fallthru
        _
      // Predicated region
      $region25: #{basic_block_forward.5} parent=11 // pred_check
        %p193 = pneg %p122
      $region26: #{basic_block_forward.5} parent=11 // pred_check_branch
        %195 = sbr.rel (%p193) target = $region28
      $region27: #{basic_block_forward.5} parent=11 // pred_region
        _
      $region28: #{basic_block_forward.5} parent=11 // pred_fallthru
        _
      // Predicated region
      $region29: #{basic_block_forward.5} parent=11 // pred_check
        %p196 = pneg %p143
      $region30: #{basic_block_forward.5} parent=11 // pred_check_branch
        %198 = sbr.rel (%p196) target = $region32
      $region31: #{basic_block_forward.5} parent=11 // pred_region
        _
      $region32: #{basic_block_forward.5} parent=11 // pred_fallthru
        _
    $region12: #{basic_block_forward.5} parent=5 // pred_fallthru
      _
    %p199 = scmp.lt.s32.totalorder %s12, 2
    // Predicated region
    $region33: #{basic_block_forward.5} parent=5 // pred_check
      %p200 = pneg %p199
    $region34: #{basic_block_forward.5} parent=5 // pred_check_branch
      %202 = sbr.rel (%p200) target = $region36
    $region35: #{basic_block_forward.5} parent=5 // pred_region
      // Predicated region
      $region37: #{basic_block_forward.5} parent=35 // pred_check
        %p203 = pneg %p32
      $region38: #{basic_block_forward.5} parent=35 // pred_check_branch
        %205 = sbr.rel (%p203) target = $region40
      $region39: #{basic_block_forward.5} parent=35 // pred_region
        %s206 = smul.u32 32, %s12
        %p207 = scmp.lt.s32.totalorder %s206, 63
        %s208 = scalar_select %p207, %s206, 63
        %s209 = smul.addr %s208, 8
        %s210 = scalar_lea.vmem %s0, %s209
        %s211 = smul.u32 32, %s12
      $region40: #{basic_block_forward.5} parent=35 // pred_fallthru
        _
    $region36: #{basic_block_forward.5} parent=5 // pred_fallthru
      _
    %p212 = scmp.le.s32.totalorder 1, %s12
    %p213 = scmp.lt.s32.totalorder %s12, 3
    %p214 = pnand %p212, %p213
    %p215 = pneg %p214
    // Predicated region
    $region41: #{basic_block_forward.5} parent=5 // pred_check
      _
    $region42: #{basic_block_forward.5} parent=5 // pred_check_branch
      %217 = sbr.rel (%p214) target = $region44
    $region43: #{basic_block_forward.5} parent=5 // pred_region
      %s218 = ssub.s32 %s12, 1
      %s219 = smul.u32 32, %s17
      %p220 = scmp.lt.s32.totalorder %s219, 63
      %s221 = scalar_select %p220, %s219, 63
      %s222 = smul.addr %s221, 8
      %s223 = scalar_lea.vmem %s0, %s222
      %p224 = pneg %p38
      %p225 = pneg %p35
      %p226 = pneg %p59
      %p227 = pneg %p56
      %p228 = pneg %p80
      %p229 = pneg %p77
      %p230 = pneg %p101
      %p231 = pneg %p98
      %p232 = pneg %p122
      %p233 = pneg %p119
      %p234 = pneg %p143
      %p235 = pneg %p140
      %p236 = pneg %p169
      %p237 = pneg %p166
      %s238 = smul.u32 32, %s17
      %p239 = scmp.lt.s32.totalorder %s238, 63
      %s240 = scalar_select %p239, %s238, 63
      %s241 = smul.addr %s240, 8
      %s242 = scalar_lea.vmem %s6, %s241
      %s243 = smul.u32 32, %s17
      %p244 = scmp.lt.s32.totalorder %s243, 63
      %s245 = scalar_select %p244, %s243, 63
      %s246 = smul.addr %s245, 8
      %s247 = scalar_lea.vmem %s0, %s246
      %s248 = smul.u32 32, %s17
      %s249 = smul.u32 32, %s17
      %p250 = scmp.lt.s32.totalorder %s249, 63
      %s251 = scalar_select %p250, %s249, 63
      %s252 = smul.addr %s251, 8
      %s253 = scalar_lea.vmem %s6, %s252
      %s254 = smul.u32 32, %s17
      %v255 = vld [vmem:[%s2] sm:$0x1]
      %v256 = vmul.f32 %v255, 0.001953125
      %v257 = vld [vmem:[%s3] sm:$0x1]
      %v258 = vmul.f32 %v257, 0.001953125
      %v259 = vmul.f32 %v256, %v256
      %v260 = vsub.f32 %v258, %v259
      %v261 = vmax.f32 %v260, 0.0
      %v262 = vadd.f32 %v261, 1e-05
      %v263 = vrsqrt.pop %v262
      %v264 = vld [vmem:[%s4] sm:$0x1]
      %v265 = vmul.f32 %v264, %v263
      %v266 = vld [vmem:[%s5] sm:$0x1]
      %v267 = vmul.f32 %v256, %v265
      %v268 = vsub.f32 %v266, %v267
      %v269 = vld [vmem:[%s247] sm:$0xff]
      %v270 = vld [vmem:[%s247 + $0x8] sm:$0xff]
      %v271 = vld [vmem:[%s247 + $0x10] sm:$0xff]
      %v272 = vld [vmem:[%s247 + $0x18] sm:$0xff]
      %v273 = vld [vmem:[%s247 + $0x20] sm:$0xff]
      %v274 = vld [vmem:[%s247 + $0x28] sm:$0xff]
      %v275 = vld [vmem:[%s247 + $0x30] sm:$0xff]
      %v276 = vld [vmem:[%s247 + $0x38] sm:$0xff]
      %v277 = vld [vmem:[%s247 + $0x40] sm:$0xff]
      %v278 = vld [vmem:[%s247 + $0x48] sm:$0xff]
      %v279 = vld [vmem:[%s247 + $0x50] sm:$0xff]
      %v280 = vld [vmem:[%s247 + $0x58] sm:$0xff]
      %v281 = vld [vmem:[%s247 + $0x60] sm:$0xff]
      %v282 = vld [vmem:[%s247 + $0x68] sm:$0xff]
      %v283 = vld [vmem:[%s247 + $0x70] sm:$0xff]
      %v284 = vld [vmem:[%s247 + $0x78] sm:$0xff]
      %v285 = vld [vmem:[%s247 + $0x80] sm:$0xff]
      %v286 = vld [vmem:[%s247 + $0x88] sm:$0xff]
      %v287 = vld [vmem:[%s247 + $0x90] sm:$0xff]
      %v288 = vld [vmem:[%s247 + $0x98] sm:$0xff]
      %v289 = vld [vmem:[%s247 + $0xa0] sm:$0xff]
      %v290 = vld [vmem:[%s247 + $0xa8] sm:$0xff]
      %v291 = vld [vmem:[%s247 + $0xb0] sm:$0xff]
      %v292 = vld [vmem:[%s247 + $0xb8] sm:$0xff]
      %v293 = vld [vmem:[%s247 + $0xc0] sm:$0xff]
      %v294 = vld [vmem:[%s247 + $0xc8] sm:$0xff]
      %v295 = vld [vmem:[%s247 + $0xd0] sm:$0xff]
      %v296 = vld [vmem:[%s247 + $0xd8] sm:$0xff]
      %v297 = vld [vmem:[%s247 + $0xe0] sm:$0xff]
      %v298 = vld [vmem:[%s247 + $0xe8] sm:$0xff]
      %v299 = vld [vmem:[%s247 + $0xf0] sm:$0xff]
      %v300 = vld [vmem:[%s247 + $0xf8] sm:$0xff]
      %v301 = vld [vmem:[%s1] sm:$0xff]
      %v302 = vld [vmem:[%s1 + $0x8] sm:$0xff]
      %v303 = vld [vmem:[%s1 + $0x10] sm:$0xff]
      %v304 = vld [vmem:[%s1 + $0x18] sm:$0xff]
      %v305 = vld [vmem:[%s1 + $0x20] sm:$0xff]
      %v306 = vld [vmem:[%s1 + $0x28] sm:$0xff]
      %v307 = vld [vmem:[%s1 + $0x30] sm:$0xff]
      %v308 = vld [vmem:[%s1 + $0x38] sm:$0xff]
      %v309 = vld [vmem:[%s1 + $0x40] sm:$0xff]
      %v310 = vld [vmem:[%s1 + $0x48] sm:$0xff]
      %v311 = vld [vmem:[%s1 + $0x50] sm:$0xff]
      %v312 = vld [vmem:[%s1 + $0x58] sm:$0xff]
      %v313 = vld [vmem:[%s1 + $0x60] sm:$0xff]
      %v314 = vld [vmem:[%s1 + $0x68] sm:$0xff]
      %v315 = vld [vmem:[%s1 + $0x70] sm:$0xff]
      %v316 = vld [vmem:[%s1 + $0x78] sm:$0xff]
      %317 = vmatprep.subr.mxu0 0.0
      %318 = vmatpush1.msra.mxu0 %v301
      %319 = vmatprep.subr.mxu0 0.0
      %320 = vmatpush1.msra.mxu0 %v302
      %321 = vmatprep.subr.mxu0 0.0
      %322 = vmatpush1.msra.mxu0 %v303
      %323 = vmatprep.subr.mxu0 0.0
      %324 = vmatpush1.msra.mxu0 %v304
      %325 = vmatprep.subr.mxu0 0.0
      %326 = vmatpush1.msra.mxu0 %v305
      %327 = vmatprep.subr.mxu0 0.0
      %328 = vmatpush1.msra.mxu0 %v306
      %329 = vmatprep.subr.mxu0 0.0
      %330 = vmatpush1.msra.mxu0 %v307
      %331 = vmatprep.subr.mxu0 0.0
      %332 = vmatpush1.msra.mxu0 %v308
      %333 = vmatprep.subr.mxu0 0.0
      %334 = vmatpush1.msra.mxu0 %v309
      %335 = vmatprep.subr.mxu0 0.0
      %336 = vmatpush1.msra.mxu0 %v310
      %337 = vmatprep.subr.mxu0 0.0
      %338 = vmatpush1.msra.mxu0 %v311
      %339 = vmatprep.subr.mxu0 0.0
      %340 = vmatpush1.msra.mxu0 %v312
      %341 = vmatprep.subr.mxu0 0.0
      %342 = vmatpush1.msra.mxu0 %v313
      %343 = vmatprep.subr.mxu0 0.0
      %344 = vmatpush1.msra.mxu0 %v314
      %345 = vmatprep.subr.mxu0 0.0
      %346 = vmatpush1.msra.mxu0 %v315
      %347 = vmatprep.subr.mxu0 0.0
      %348 = vmatpush1.msra.mxu0 %v316
      %349 = vmatprep.subr.mxu0 0.0
      %350 = vmatpush1.msra.mxu0 0.0
      %351 = vmatprep.subr.mxu0 0.0
      %352 = vmatpush1.msra.mxu0 0.0
      %353 = vmatprep.subr.mxu0 0.0
      %354 = vmatpush1.msra.mxu0 0.0
      %355 = vmatprep.subr.mxu0 0.0
      %356 = vmatpush1.msra.mxu0 0.0
      %357 = vmatprep.subr.mxu0 0.0
      %358 = vmatpush1.msra.mxu0 0.0
      %359 = vmatprep.subr.mxu0 0.0
      %360 = vmatpush1.msra.mxu0 0.0
      %361 = vmatprep.subr.mxu0 0.0
      %362 = vmatpush1.msra.mxu0 0.0
      %363 = vmatprep.subr.mxu0 0.0
      %364 = vmatpush1.msra.mxu0 0.0
      %365 = vmatprep.subr.mxu0 0.0
      %366 = vmatpush1.msra.mxu0 0.0
      %367 = vmatprep.subr.mxu0 0.0
      %368 = vmatpush1.msra.mxu0 0.0
      %369 = vmatprep.subr.mxu0 0.0
      %370 = vmatpush1.msra.mxu0 0.0
      %371 = vmatprep.subr.mxu0 0.0
      %372 = vmatpush1.msra.mxu0 0.0
      %373 = vmatprep.subr.mxu0 0.0
      %374 = vmatpush1.msra.mxu0 0.0
      %375 = vmatprep.subr.mxu0 0.0
      %376 = vmatpush1.msra.mxu0 0.0
      %377 = vmatprep.subr.mxu0 0.0
      %378 = vmatpush1.msra.mxu0 0.0
      %379 = vmatprep.subr.mxu0 0.0
      %380 = vmatpush1.msra.mxu0 0.0
      %381 = vmatprep.mubr.f32.mxu0 0.0
      %382 = vmatmul.mubr.f32.gmra.mrb[0].mxu0 %v269
      %v383 = vpop.f32.mrb[0].mxu0
      %v384 = vadd.f32 0.0, %v383
      %v385 = vpop.f32.mrb[0].mxu0
      %386 = vmatprep.mubr.f32.mxu0 0.0
      %387 = vmatmul.mubr.f32.gmra.mrb[0].mxu0 %v270
      %v388 = vpop.f32.mrb[0].mxu0
      %v389 = vadd.f32 0.0, %v388
      %v390 = vpop.f32.mrb[0].mxu0
      %391 = vmatprep.mubr.f32.mxu0 0.0
      %392 = vmatmul.mubr.f32.gmra.mrb[0].mxu0 %v271
      %v393 = vpop.f32.mrb[0].mxu0
      %v394 = vadd.f32 0.0, %v393
      %v395 = vpop.f32.mrb[0].mxu0
      %396 = vmatprep.mubr.f32.mxu0 0.0
      %397 = vmatmul.mubr.f32.gmra.mrb[0].mxu0 %v272
      %v398 = vpop.f32.mrb[0].mxu0
      %v399 = vadd.f32 0.0, %v398
      %v400 = vpop.f32.mrb[0].mxu0
      %401 = vmatprep.mubr.f32.mxu0 0.0
      %402 = vmatmul.mubr.f32.gmra.mrb[0].mxu0 %v273
      %v403 = vpop.f32.mrb[0].mxu0
      %v404 = vadd.f32 0.0, %v403
      %v405 = vpop.f32.mrb[0].mxu0
      %406 = vmatprep.mubr.f32.mxu0 0.0
      %407 = vmatmul.mubr.f32.gmra.mrb[0].mxu0 %v274
      %v408 = vpop.f32.mrb[0].mxu0
      %v409 = vadd.f32 0.0, %v408
      %v410 = vpop.f32.mrb[0].mxu0
      %411 = vmatprep.mubr.f32.mxu0 0.0
      %412 = vmatmul.mubr.f32.gmra.mrb[0].mxu0 %v275
      %v413 = vpop.f32.mrb[0].mxu0
      %v414 = vadd.f32 0.0, %v413
      %v415 = vpop.f32.mrb[0].mxu0
      %416 = vmatprep.mubr.f32.mxu0 0.0
      %417 = vmatmul.mubr.f32.gmra.mrb[0].mxu0 %v276
      %v418 = vpop.f32.mrb[0].mxu0
      %v419 = vadd.f32 0.0, %v418
      %v420 = vpop.f32.mrb[0].mxu0
      %421 = vmatprep.mubr.f32.mxu0 0.0
      %422 = vmatmul.mubr.f32.gmra.mrb[0].mxu0 %v277
      %v423 = vpop.f32.mrb[0].mxu0
      %v424 = vadd.f32 0.0, %v423
      %v425 = vpop.f32.mrb[0].mxu0
      %426 = vmatprep.mubr.f32.mxu0 0.0
      %427 = vmatmul.mubr.f32.gmra.mrb[0].mxu0 %v278
      %v428 = vpop.f32.mrb[0].mxu0
      %v429 = vadd.f32 0.0, %v428
      %v430 = vpop.f32.mrb[0].mxu0
      %431 = vmatprep.mubr.f32.mxu0 0.0
      %432 = vmatmul.mubr.f32.gmra.mrb[0].mxu0 %v279
      %v433 = vpop.f32.mrb[0].mxu0
      %v434 = vadd.f32 0.0, %v433
      %v435 = vpop.f32.mrb[0].mxu0
      %436 = vmatprep.mubr.f32.mxu0 0.0
      %437 = vmatmul.mubr.f32.gmra.mrb[0].mxu0 %v280
      %v438 = vpop.f32.mrb[0].mxu0
      %v439 = vadd.f32 0.0, %v438
      %v440 = vpop.f32.mrb[0].mxu0
      %441 = vmatprep.mubr.f32.mxu0 0.0
      %442 = vmatmul.mubr.f32.gmra.mrb[0].mxu0 %v281
      %v443 = vpop.f32.mrb[0].mxu0
      %v444 = vadd.f32 0.0, %v443
      %v445 = vpop.f32.mrb[0].mxu0
      %446 = vmatprep.mubr.f32.mxu0 0.0
      %447 = vmatmul.mubr.f32.gmra.mrb[0].mxu0 %v282
      %v448 = vpop.f32.mrb[0].mxu0
      %v449 = vadd.f32 0.0, %v448
      %v450 = vpop.f32.mrb[0].mxu0
      %451 = vmatprep.mubr.f32.mxu0 0.0
      %452 = vmatmul.mubr.f32.gmra.mrb[0].mxu0 %v283
      %v453 = vpop.f32.mrb[0].mxu0
      %v454 = vadd.f32 0.0, %v453
      %v455 = vpop.f32.mrb[0].mxu0
      %456 = vmatprep.mubr.f32.mxu0 0.0
      %457 = vmatmul.mubr.f32.gmra.mrb[0].mxu0 %v284
      %v458 = vpop.f32.mrb[0].mxu0
      %v459 = vadd.f32 0.0, %v458
      %v460 = vpop.f32.mrb[0].mxu0
      %461 = vmatprep.mubr.f32.mxu0 0.0
      %462 = vmatmul.mubr.f32.gmra.mrb[0].mxu0 %v285
      %v463 = vpop.f32.mrb[0].mxu0
      %v464 = vadd.f32 0.0, %v463
      %v465 = vpop.f32.mrb[0].mxu0
      %466 = vmatprep.mubr.f32.mxu0 0.0
      %467 = vmatmul.mubr.f32.gmra.mrb[0].mxu0 %v286
      %v468 = vpop.f32.mrb[0].mxu0
      %v469 = vadd.f32 0.0, %v468
      %v470 = vpop.f32.mrb[0].mxu0
      %471 = vmatprep.mubr.f32.mxu0 0.0
      %472 = vmatmul.mubr.f32.gmra.mrb[0].mxu0 %v287
      %v473 = vpop.f32.mrb[0].mxu0
      %v474 = vadd.f32 0.0, %v473
      %v475 = vpop.f32.mrb[0].mxu0
      %476 = vmatprep.mubr.f32.mxu0 0.0
      %477 = vmatmul.mubr.f32.gmra.mrb[0].mxu0 %v288
      %v478 = vpop.f32.mrb[0].mxu0
      %v479 = vadd.f32 0.0, %v478
      %v480 = vpop.f32.mrb[0].mxu0
      %481 = vmatprep.mubr.f32.mxu0 0.0
      %482 = vmatmul.mubr.f32.gmra.mrb[0].mxu0 %v289
      %v483 = vpop.f32.mrb[0].mxu0
      %v484 = vadd.f32 0.0, %v483
      %v485 = vpop.f32.mrb[0].mxu0
      %486 = vmatprep.mubr.f32.mxu0 0.0
      %487 = vmatmul.mubr.f32.gmra.mrb[0].mxu0 %v290
      %v488 = vpop.f32.mrb[0].mxu0
      %v489 = vadd.f32 0.0, %v488
      %v490 = vpop.f32.mrb[0].mxu0
      %491 = vmatprep.mubr.f32.mxu0 0.0
      %492 = vmatmul.mubr.f32.gmra.mrb[0].mxu0 %v291
      %v493 = vpop.f32.mrb[0].mxu0
      %v494 = vadd.f32 0.0, %v493
      %v495 = vpop.f32.mrb[0].mxu0
      %496 = vmatprep.mubr.f32.mxu0 0.0
      %497 = vmatmul.mubr.f32.gmra.mrb[0].mxu0 %v292
      %v498 = vpop.f32.mrb[0].mxu0
      %v499 = vadd.f32 0.0, %v498
      %v500 = vpop.f32.mrb[0].mxu0
      %501 = vmatprep.mubr.f32.mxu0 0.0
      %502 = vmatmul.mubr.f32.gmra.mrb[0].mxu0 %v293
      %v503 = vpop.f32.mrb[0].mxu0
      %v504 = vadd.f32 0.0, %v503
      %v505 = vpop.f32.mrb[0].mxu0
      %506 = vmatprep.mubr.f32.mxu0 0.0
      %507 = vmatmul.mubr.f32.gmra.mrb[0].mxu0 %v294
      %v508 = vpop.f32.mrb[0].mxu0
      %v509 = vadd.f32 0.0, %v508
      %v510 = vpop.f32.mrb[0].mxu0
      %511 = vmatprep.mubr.f32.mxu0 0.0
      %512 = vmatmul.mubr.f32.gmra.mrb[0].mxu0 %v295
      %v513 = vpop.f32.mrb[0].mxu0
      %v514 = vadd.f32 0.0, %v513
      %v515 = vpop.f32.mrb[0].mxu0
      %516 = vmatprep.mubr.f32.mxu0 0.0
      %517 = vmatmul.mubr.f32.gmra.mrb[0].mxu0 %v296
      %v518 = vpop.f32.mrb[0].mxu0
      %v519 = vadd.f32 0.0, %v518
      %v520 = vpop.f32.mrb[0].mxu0
      %521 = vmatprep.mubr.f32.mxu0 0.0
      %522 = vmatmul.mubr.f32.gmra.mrb[0].mxu0 %v297
      %v523 = vpop.f32.mrb[0].mxu0
      %v524 = vadd.f32 0.0, %v523
      %v525 = vpop.f32.mrb[0].mxu0
      %526 = vmatprep.mubr.f32.mxu0 0.0
      %527 = vmatmul.mubr.f32.gmra.mrb[0].mxu0 %v298
      %v528 = vpop.f32.mrb[0].mxu0
      %v529 = vadd.f32 0.0, %v528
      %v530 = vpop.f32.mrb[0].mxu0
      %531 = vmatprep.mubr.f32.mxu0 0.0
      %532 = vmatmul.mubr.f32.gmra.mrb[0].mxu0 %v299
      %v533 = vpop.f32.mrb[0].mxu0
      %v534 = vadd.f32 0.0, %v533
      %v535 = vpop.f32.mrb[0].mxu0
      %536 = vmatprep.mubr.f32.mxu0 0.0
      %537 = vmatmul.mubr.f32.gmra.mrb[0].mxu0 %v300
      %v538 = vpop.f32.mrb[0].mxu0
      %v539 = vadd.f32 0.0, %v538
      %v540 = vpop.f32.mrb[0].mxu0
      %541 = vdwg.mxu0
      %v543 = vlaneseq
      %v544 = vshrl.u32 %v543, 7
      %v545 = vsub.s32 0, %v544
      %v546 = vrot.slane %v265, %v545
      %v548 = vmul.f32 %v384, %v546
      %v549 = vmul.f32 %v389, %v546
      %v550 = vmul.f32 %v394, %v546
      %v551 = vmul.f32 %v399, %v546
      %v552 = vmul.f32 %v404, %v546
      %v553 = vmul.f32 %v409, %v546
      %v554 = vmul.f32 %v414, %v546
      %v555 = vmul.f32 %v419, %v546
      %v556 = vmul.f32 %v424, %v546
      %v557 = vmul.f32 %v429, %v546
      %v558 = vmul.f32 %v434, %v546
      %v559 = vmul.f32 %v439, %v546
      %v560 = vmul.f32 %v444, %v546
      %v561 = vmul.f32 %v449, %v546
      %v562 = vmul.f32 %v454, %v546
      %v563 = vmul.f32 %v459, %v546
      %v564 = vmul.f32 %v464, %v546
      %v565 = vmul.f32 %v469, %v546
      %v566 = vmul.f32 %v474, %v546
      %v567 = vmul.f32 %v479, %v546
      %v568 = vmul.f32 %v484, %v546
      %v569 = vmul.f32 %v489, %v546
      %v570 = vmul.f32 %v494, %v546
      %v571 = vmul.f32 %v499, %v546
      %v572 = vmul.f32 %v504, %v546
      %v573 = vmul.f32 %v509, %v546
      %v574 = vmul.f32 %v514, %v546
      %v575 = vmul.f32 %v519, %v546
      %v576 = vmul.f32 %v524, %v546
      %v577 = vmul.f32 %v529, %v546
      %v578 = vmul.f32 %v534, %v546
      %v579 = vmul.f32 %v539, %v546
      %v581 = vlaneseq
      %v582 = vshrl.u32 %v581, 7
      %v583 = vsub.s32 0, %v582
      %v584 = vrot.slane %v268, %v583
      %v586 = vadd.f32 %v548, %v584
      %v587 = vadd.f32 %v549, %v584
      %v588 = vadd.f32 %v550, %v584
      %v589 = vadd.f32 %v551, %v584
      %v590 = vadd.f32 %v552, %v584
      %v591 = vadd.f32 %v553, %v584
      %v592 = vadd.f32 %v554, %v584
      %v593 = vadd.f32 %v555, %v584
      %v594 = vadd.f32 %v556, %v584
      %v595 = vadd.f32 %v557, %v584
      %v596 = vadd.f32 %v558, %v584
      %v597 = vadd.f32 %v559, %v584
      %v598 = vadd.f32 %v560, %v584
      %v599 = vadd.f32 %v561, %v584
      %v600 = vadd.f32 %v562, %v584
      %v601 = vadd.f32 %v563, %v584
      %v602 = vadd.f32 %v564, %v584
      %v603 = vadd.f32 %v565, %v584
      %v604 = vadd.f32 %v566, %v584
      %v605 = vadd.f32 %v567, %v584
      %v606 = vadd.f32 %v568, %v584
      %v607 = vadd.f32 %v569, %v584
      %v608 = vadd.f32 %v570, %v584
      %v609 = vadd.f32 %v571, %v584
      %v610 = vadd.f32 %v572, %v584
      %v611 = vadd.f32 %v573, %v584
      %v612 = vadd.f32 %v574, %v584
      %v613 = vadd.f32 %v575, %v584
      %v614 = vadd.f32 %v576, %v584
      %v615 = vadd.f32 %v577, %v584
      %v616 = vadd.f32 %v578, %v584
      %v617 = vadd.f32 %v579, %v584
      %v618 = vmax.f32 %v586, 0.0
      %v619 = vmax.f32 %v587, 0.0
      %v620 = vmax.f32 %v588, 0.0
      %v621 = vmax.f32 %v589, 0.0
      %v622 = vmax.f32 %v590, 0.0
      %v623 = vmax.f32 %v591, 0.0
      %v624 = vmax.f32 %v592, 0.0
      %v625 = vmax.f32 %v593, 0.0
      %v626 = vmax.f32 %v594, 0.0
      %v627 = vmax.f32 %v595, 0.0
      %v628 = vmax.f32 %v596, 0.0
      %v629 = vmax.f32 %v597, 0.0
      %v630 = vmax.f32 %v598, 0.0
      %v631 = vmax.f32 %v599, 0.0
      %v632 = vmax.f32 %v600, 0.0
      %v633 = vmax.f32 %v601, 0.0
      %v634 = vmax.f32 %v602, 0.0
      %v635 = vmax.f32 %v603, 0.0
      %v636 = vmax.f32 %v604, 0.0
      %v637 = vmax.f32 %v605, 0.0
      %v638 = vmax.f32 %v606, 0.0
      %v639 = vmax.f32 %v607, 0.0
      %v640 = vmax.f32 %v608, 0.0
      %v641 = vmax.f32 %v609, 0.0
      %v642 = vmax.f32 %v610, 0.0
      %v643 = vmax.f32 %v611, 0.0
      %v644 = vmax.f32 %v612, 0.0
      %v645 = vmax.f32 %v613, 0.0
      %v646 = vmax.f32 %v614, 0.0
      %v647 = vmax.f32 %v615, 0.0
      %v648 = vmax.f32 %v616, 0.0
      %v649 = vmax.f32 %v617, 0.0
      %650 = vst [vmem:[%s253] sm:$0xff] %v618
      %651 = vst [vmem:[%s253 + $0x8] sm:$0xff] %v619
      %652 = vst [vmem:[%s253 + $0x10] sm:$0xff] %v620
      %653 = vst [vmem:[%s253 + $0x18] sm:$0xff] %v621
      %654 = vst [vmem:[%s253 + $0x20] sm:$0xff] %v622
      %655 = vst [vmem:[%s253 + $0x28] sm:$0xff] %v623
      %656 = vst [vmem:[%s253 + $0x30] sm:$0xff] %v624
      %657 = vst [vmem:[%s253 + $0x38] sm:$0xff] %v625
      %658 = vst [vmem:[%s253 + $0x40] sm:$0xff] %v626
      %659 = vst [vmem:[%s253 + $0x48] sm:$0xff] %v627
      %660 = vst [vmem:[%s253 + $0x50] sm:$0xff] %v628
      %661 = vst [vmem:[%s253 + $0x58] sm:$0xff] %v629
      %662 = vst [vmem:[%s253 + $0x60] sm:$0xff] %v630
      %663 = vst [vmem:[%s253 + $0x68] sm:$0xff] %v631
      %664 = vst [vmem:[%s253 + $0x70] sm:$0xff] %v632
      %665 = vst [vmem:[%s253 + $0x78] sm:$0xff] %v633
      %666 = vst [vmem:[%s253 + $0x80] sm:$0xff] %v634
      %667 = vst [vmem:[%s253 + $0x88] sm:$0xff] %v635
      %668 = vst [vmem:[%s253 + $0x90] sm:$0xff] %v636
      %669 = vst [vmem:[%s253 + $0x98] sm:$0xff] %v637
      %670 = vst [vmem:[%s253 + $0xa0] sm:$0xff] %v638
      %671 = vst [vmem:[%s253 + $0xa8] sm:$0xff] %v639
      %672 = vst [vmem:[%s253 + $0xb0] sm:$0xff] %v640
      %673 = vst [vmem:[%s253 + $0xb8] sm:$0xff] %v641
      %674 = vst [vmem:[%s253 + $0xc0] sm:$0xff] %v642
      %675 = vst [vmem:[%s253 + $0xc8] sm:$0xff] %v643
      %676 = vst [vmem:[%s253 + $0xd0] sm:$0xff] %v644
      %677 = vst [vmem:[%s253 + $0xd8] sm:$0xff] %v645
      %678 = vst [vmem:[%s253 + $0xe0] sm:$0xff] %v646
      %679 = vst [vmem:[%s253 + $0xe8] sm:$0xff] %v647
      %680 = vst [vmem:[%s253 + $0xf0] sm:$0xff] %v648
      %681 = vst [vmem:[%s253 + $0xf8] sm:$0xff] %v649
      %s682 = smul.u32 32, %s17
      %p683 = scmp.lt.s32.totalorder %s682, 63
      %s684 = scalar_select %p683, %s682, 63
      %s685 = smul.addr %s684, 8
      %s686 = scalar_lea.vmem %s6, %s685
      // Predicated region
      $region45: #{basic_block_forward.5} parent=43 // pred_check
        %p687 = pneg %p166
      $region46: #{basic_block_forward.5} parent=43 // pred_check_branch
        %689 = sbr.rel (%p687) target = $region48
      $region47: #{basic_block_forward.5} parent=43 // pred_region
        %s690 = smul.u32 32, %s17
      $region48: #{basic_block_forward.5} parent=43 // pred_fallthru
        _
    $region44: #{basic_block_forward.5} parent=5 // pred_fallthru
      _
    %p691 = scmp.le.s32.totalorder 2, %s12
    // Predicated region
    $region49: #{basic_block_forward.5} parent=5 // pred_check
      %p692 = pneg %p691
    $region50: #{basic_block_forward.5} parent=5 // pred_check_branch
      %694 = sbr.rel (%p692) target = $region52
    $region51: #{basic_block_forward.5} parent=5 // pred_region
      %s695 = ssub.s32 %s12, 2
      // Predicated region
      $region53: #{basic_block_forward.5} parent=51 // pred_check
        %p696 = pneg %p172
      $region54: #{basic_block_forward.5} parent=51 // pred_check_branch
        %698 = sbr.rel (%p696) target = $region56
      $region55: #{basic_block_forward.5} parent=51 // pred_region
        %s699 = smul.u32 32, %s18
        %p700 = scmp.lt.s32.totalorder %s699, 63
        %s701 = scalar_select %p700, %s699, 63
        %s702 = smul.addr %s701, 8
        %s703 = scalar_lea.vmem %s6, %s702
      $region56: #{basic_block_forward.5} parent=51 // pred_fallthru
        _
    $region52: #{basic_block_forward.5} parent=5 // pred_fallthru
      _
  $region6: #{basic_block_forward.5} parent=0 // loop_footer
    %s16 = sadd.s32 1, %s12
  $region7: #{basic_block_forward.5} parent=0 // loop_footer_branch
    %11 = sbr.rel target = $region3
  $region8: #{basic_block_forward.5} parent=0 // loop_exit
    _

// kernel: basic_block_forward.7
$region0: #{basic_block_forward.7}
  #allocation0 [shape = 'u32[]', space=smem, size = 0x4, offset = 0x4, fixed_abs, tag = 'smem constant byte address 0x4 - core index']
  #allocation1 [shape = 'u32[144,128]{1,0:T(1,128)}', space=vmem, size = 0x12000, scoped, tag = 'internal scratch']
  %s0 = inlined_call_operand.vmem [shape: f32[512,128], index: 0, kind: input, shape index: {}]
  %s1 = inlined_call_operand.vmem [shape: f32[128,128], index: 1, kind: input, shape index: {}]
  %s2 = inlined_call_operand.vmem [shape: f32[1,128], index: 2, kind: input, shape index: {}]
  %s3 = inlined_call_operand.vmem [shape: f32[1,128], index: 3, kind: input, shape index: {}]
  %s4 = inlined_call_operand.vmem [shape: f32[1,128], index: 4, kind: input, shape index: {}]
  %s5 = inlined_call_operand.vmem [shape: f32[1,128], index: 5, kind: input, shape index: {}]
  %s6 = inlined_call_operand.vmem [shape: f32[512,128], index: 6, kind: input, shape index: {}]
  %s7 = inlined_call_operand.vmem [shape: f32[512,128], index: 7, kind: output, shape index: {}]
  %s8 = sld [smem:[#allocation0]]
  $region61: #{basic_block_forward.7} parent=0
    _
  %s10 = ssub.s32 1, %s8
  %s11 = scalar_select 0, %s10, %s8
  loop: start=0, step=1, limit=4
  $region2: #{basic_block_forward.7} parent=0 // loop_pre_header
    _
  $region3: #{basic_block_forward.7} parent=0 // loop_header
    %s13 = sphi 0, %s17
    %p14 = scmp.ge.s32.totalorder %s13, 4
    %s23 = sphi 0, %s25
    %s26 = sphi 0, %s23
    %s27 = sphi 0, %s26
    %s43 = sphi 0, %s27
    %s47 = sphi 0, %s47
    %s49 = sphi 0, %s47
    %s50 = sphi 0, %s49
    %s64 = sphi 0, %s50
    %s68 = sphi 0, %s68
    %s70 = sphi 0, %s68
    %s71 = sphi 0, %s70
    %s85 = sphi 0, %s71
    %s89 = sphi 0, %s89
    %s91 = sphi 0, %s89
    %s92 = sphi 0, %s91
    %s106 = sphi 0, %s92
    %s110 = sphi 0, %s110
    %s112 = sphi 0, %s110
    %s113 = sphi 0, %s112
    %s127 = sphi 0, %s113
    %s131 = sphi 0, %s131
    %s133 = sphi 0, %s131
    %s134 = sphi 0, %s133
    %s148 = sphi 0, %s134
    %s154 = sphi 0, %s156
    %s157 = sphi 0, %s154
    %s158 = sphi 0, %s157
    %s174 = sphi 0, %s158
    %s180 = sphi 0, %s182
    %s183 = sphi 0, %s180
    %s184 = sphi 0, %s183
    %s200 = sphi 0, %s184
  $region4: #{basic_block_forward.7} parent=0 // loop_header_branch
    %16 = sbr.rel (%p14) target = $region8
  $region5: #{basic_block_forward.7} parent=0 // loop_body
    %s18 = ssub.s32 %s13, 1
    %s19 = ssub.s32 %s13, 2
    %s20 = sadd.s32 %s13, 1
    %s21 = ssub.s32 %s13, %s20
    %p22 = scmp.eq.s32.totalorder %s21, 0
    %s24 = sadd.s32 %s23, 1
    %s25 = scalar_select %p22, %s23, %s24
    %p28 = pneg %p22
    %p29 = scmp.eq.s32.totalorder %s13, 1
    %p30 = por %p28, %p29
    %p31 = scmp.ne.s32.totalorder %s23, %s26
    %p32 = scmp.eq.s32.totalorder %s13, 0
    %p33 = por %p31, %p32
    %p34 = scmp.ne.s32.totalorder %s23, %s26
    %p35 = scmp.eq.s32.totalorder %s18, 1
    %p36 = por %p34, %p35
    %p37 = scmp.ne.s32.totalorder %s26, %s27
    %p38 = scmp.eq.s32.totalorder %s18, 0
    %p39 = por %p37, %p38
    %p40 = scmp.ne.s32.totalorder %s26, %s27
    %p41 = scmp.eq.s32.totalorder %s19, 1
    %p42 = por %p40, %p41
    %p44 = scmp.ne.s32.totalorder %s27, %s43
    %p45 = scmp.eq.s32.totalorder %s19, 0
    %p46 = por %p44, %p45
    %s48 = sadd.s32 %s47, 1
    %p51 = scmp.eq.s32.totalorder %s13, 1
    %p52 = scmp.ne.s32.totalorder %s47, %s49
    %p53 = scmp.eq.s32.totalorder %s13, 0
    %p54 = por %p52, %p53
    %p55 = scmp.ne.s32.totalorder %s47, %s49
    %p56 = scmp.eq.s32.totalorder %s18, 1
    %p57 = por %p55, %p56
    %p58 = scmp.ne.s32.totalorder %s49, %s50
    %p59 = scmp.eq.s32.totalorder %s18, 0
    %p60 = por %p58, %p59
    %p61 = scmp.ne.s32.totalorder %s49, %s50
    %p62 = scmp.eq.s32.totalorder %s19, 1
    %p63 = por %p61, %p62
    %p65 = scmp.ne.s32.totalorder %s50, %s64
    %p66 = scmp.eq.s32.totalorder %s19, 0
    %p67 = por %p65, %p66
    %s69 = sadd.s32 %s68, 1
    %p72 = scmp.eq.s32.totalorder %s13, 1
    %p73 = scmp.ne.s32.totalorder %s68, %s70
    %p74 = scmp.eq.s32.totalorder %s13, 0
    %p75 = por %p73, %p74
    %p76 = scmp.ne.s32.totalorder %s68, %s70
    %p77 = scmp.eq.s32.totalorder %s18, 1
    %p78 = por %p76, %p77
    %p79 = scmp.ne.s32.totalorder %s70, %s71
    %p80 = scmp.eq.s32.totalorder %s18, 0
    %p81 = por %p79, %p80
    %p82 = scmp.ne.s32.totalorder %s70, %s71
    %p83 = scmp.eq.s32.totalorder %s19, 1
    %p84 = por %p82, %p83
    %p86 = scmp.ne.s32.totalorder %s71, %s85
    %p87 = scmp.eq.s32.totalorder %s19, 0
    %p88 = por %p86, %p87
    %s90 = sadd.s32 %s89, 1
    %p93 = scmp.eq.s32.totalorder %s13, 1
    %p94 = scmp.ne.s32.totalorder %s89, %s91
    %p95 = scmp.eq.s32.totalorder %s13, 0
    %p96 = por %p94, %p95
    %p97 = scmp.ne.s32.totalorder %s89, %s91
    %p98 = scmp.eq.s32.totalorder %s18, 1
    %p99 = por %p97, %p98
    %p100 = scmp.ne.s32.totalorder %s91, %s92
    %p101 = scmp.eq.s32.totalorder %s18, 0
    %p102 = por %p100, %p101
    %p103 = scmp.ne.s32.totalorder %s91, %s92
    %p104 = scmp.eq.s32.totalorder %s19, 1
    %p105 = por %p103, %p104
    %p107 = scmp.ne.s32.totalorder %s92, %s106
    %p108 = scmp.eq.s32.totalorder %s19, 0
    %p109 = por %p107, %p108
    %s111 = sadd.s32 %s110, 1
    %p114 = scmp.eq.s32.totalorder %s13, 1
    %p115 = scmp.ne.s32.totalorder %s110, %s112
    %p116 = scmp.eq.s32.totalorder %s13, 0
    %p117 = por %p115, %p116
    %p118 = scmp.ne.s32.totalorder %s110, %s112
    %p119 = scmp.eq.s32.totalorder %s18, 1
    %p120 = por %p118, %p119
    %p121 = scmp.ne.s32.totalorder %s112, %s113
    %p122 = scmp.eq.s32.totalorder %s18, 0
    %p123 = por %p121, %p122
    %p124 = scmp.ne.s32.totalorder %s112, %s113
    %p125 = scmp.eq.s32.totalorder %s19, 1
    %p126 = por %p124, %p125
    %p128 = scmp.ne.s32.totalorder %s113, %s127
    %p129 = scmp.eq.s32.totalorder %s19, 0
    %p130 = por %p128, %p129
    %s132 = sadd.s32 %s131, 1
    %p135 = scmp.eq.s32.totalorder %s13, 1
    %p136 = scmp.ne.s32.totalorder %s131, %s133
    %p137 = scmp.eq.s32.totalorder %s13, 0
    %p138 = por %p136, %p137
    %p139 = scmp.ne.s32.totalorder %s131, %s133
    %p140 = scmp.eq.s32.totalorder %s18, 1
    %p141 = por %p139, %p140
    %p142 = scmp.ne.s32.totalorder %s133, %s134
    %p143 = scmp.eq.s32.totalorder %s18, 0
    %p144 = por %p142, %p143
    %p145 = scmp.ne.s32.totalorder %s133, %s134
    %p146 = scmp.eq.s32.totalorder %s19, 1
    %p147 = por %p145, %p146
    %p149 = scmp.ne.s32.totalorder %s134, %s148
    %p150 = scmp.eq.s32.totalorder %s19, 0
    %p151 = por %p149, %p150
    %s152 = ssub.s32 %s13, %s20
    %p153 = scmp.eq.s32.totalorder %s152, 0
    %s155 = sadd.s32 %s154, 1
    %s156 = scalar_select %p153, %s154, %s155
    %p159 = pneg %p153
    %p160 = scmp.eq.s32.totalorder %s13, 1
    %p161 = por %p159, %p160
    %p162 = scmp.ne.s32.totalorder %s154, %s157
    %p163 = scmp.eq.s32.totalorder %s13, 0
    %p164 = por %p162, %p163
    %p165 = scmp.ne.s32.totalorder %s154, %s157
    %p166 = scmp.eq.s32.totalorder %s18, 1
    %p167 = por %p165, %p166
    %p168 = scmp.ne.s32.totalorder %s157, %s158
    %p169 = scmp.eq.s32.totalorder %s18, 0
    %p170 = por %p168, %p169
    %p171 = scmp.ne.s32.totalorder %s157, %s158
    %p172 = scmp.eq.s32.totalorder %s19, 1
    %p173 = por %p171, %p172
    %p175 = scmp.ne.s32.totalorder %s158, %s174
    %p176 = scmp.eq.s32.totalorder %s19, 0
    %p177 = por %p175, %p176
    %s178 = ssub.s32 %s13, %s20
    %p179 = scmp.eq.s32.totalorder %s178, 0
    %s181 = sadd.s32 %s180, 1
    %s182 = scalar_select %p179, %s180, %s181
    %p185 = pneg %p179
    %p186 = scmp.eq.s32.totalorder %s13, 1
    %p187 = por %p185, %p186
    %p188 = scmp.ne.s32.totalorder %s180, %s183
    %p189 = scmp.eq.s32.totalorder %s13, 0
    %p190 = por %p188, %p189
    %p191 = scmp.ne.s32.totalorder %s180, %s183
    %p192 = scmp.eq.s32.totalorder %s18, 1
    %p193 = por %p191, %p192
    %p194 = scmp.ne.s32.totalorder %s183, %s184
    %p195 = scmp.eq.s32.totalorder %s18, 0
    %p196 = por %p194, %p195
    %p197 = scmp.ne.s32.totalorder %s183, %s184
    %p198 = scmp.eq.s32.totalorder %s19, 1
    %p199 = por %p197, %p198
    %p201 = scmp.ne.s32.totalorder %s184, %s200
    %p202 = scmp.eq.s32.totalorder %s19, 0
    %p203 = por %p201, %p202
    %p204 = scmp.le.s32.totalorder 1, %s13
    %p205 = scmp.lt.s32.totalorder %s13, 3
    %p206 = pnand %p204, %p205
    %p207 = pneg %p206
    // Predicated region
    $region9: #{basic_block_forward.7} parent=5 // pred_check
      _
    $region10: #{basic_block_forward.7} parent=5 // pred_check_branch
      %209 = sbr.rel (%p206) target = $region12
    $region11: #{basic_block_forward.7} parent=5 // pred_region
      %s210 = ssub.s32 %s13, 1
      // Predicated region
      $region13: #{basic_block_forward.7} parent=11 // pred_check
        %p211 = pneg %p60
      $region14: #{basic_block_forward.7} parent=11 // pred_check_branch
        %213 = sbr.rel (%p211) target = $region16
      $region15: #{basic_block_forward.7} parent=11 // pred_region
        _
      $region16: #{basic_block_forward.7} parent=11 // pred_fallthru
        _
      // Predicated region
      $region17: #{basic_block_forward.7} parent=11 // pred_check
        %p214 = pneg %p81
      $region18: #{basic_block_forward.7} parent=11 // pred_check_branch
        %216 = sbr.rel (%p214) target = $region20
      $region19: #{basic_block_forward.7} parent=11 // pred_region
        _
      $region20: #{basic_block_forward.7} parent=11 // pred_fallthru
        _
      // Predicated region
      $region21: #{basic_block_forward.7} parent=11 // pred_check
        %p217 = pneg %p102
      $region22: #{basic_block_forward.7} parent=11 // pred_check_branch
        %219 = sbr.rel (%p217) target = $region24
      $region23: #{basic_block_forward.7} parent=11 // pred_region
        _
      $region24: #{basic_block_forward.7} parent=11 // pred_fallthru
        _
      // Predicated region
      $region25: #{basic_block_forward.7} parent=11 // pred_check
        %p220 = pneg %p123
      $region26: #{basic_block_forward.7} parent=11 // pred_check_branch
        %222 = sbr.rel (%p220) target = $region28
      $region27: #{basic_block_forward.7} parent=11 // pred_region
        _
      $region28: #{basic_block_forward.7} parent=11 // pred_fallthru
        _
      // Predicated region
      $region29: #{basic_block_forward.7} parent=11 // pred_check
        %p223 = pneg %p144
      $region30: #{basic_block_forward.7} parent=11 // pred_check_branch
        %225 = sbr.rel (%p223) target = $region32
      $region31: #{basic_block_forward.7} parent=11 // pred_region
        _
      $region32: #{basic_block_forward.7} parent=11 // pred_fallthru
        _
    $region12: #{basic_block_forward.7} parent=5 // pred_fallthru
      _
    %p226 = scmp.lt.s32.totalorder %s13, 2
    // Predicated region
    $region33: #{basic_block_forward.7} parent=5 // pred_check
      %p227 = pneg %p226
    $region34: #{basic_block_forward.7} parent=5 // pred_check_branch
      %229 = sbr.rel (%p227) target = $region36
    $region35: #{basic_block_forward.7} parent=5 // pred_region
      // Predicated region
      $region37: #{basic_block_forward.7} parent=35 // pred_check
        %p230 = pneg %p33
      $region38: #{basic_block_forward.7} parent=35 // pred_check_branch
        %232 = sbr.rel (%p230) target = $region40
      $region39: #{basic_block_forward.7} parent=35 // pred_region
        %s233 = smul.u32 32, %s13
        %p234 = scmp.lt.s32.totalorder %s233, 63
        %s235 = scalar_select %p234, %s233, 63
        %s236 = smul.addr %s235, 8
        %s237 = scalar_lea.vmem %s0, %s236
        %s238 = smul.u32 32, %s13
      $region40: #{basic_block_forward.7} parent=35 // pred_fallthru
        _
      // Predicated region
      $region41: #{basic_block_forward.7} parent=35 // pred_check
        %p239 = pneg %p164
      $region42: #{basic_block_forward.7} parent=35 // pred_check_branch
        %241 = sbr.rel (%p239) target = $region44
      $region43: #{basic_block_forward.7} parent=35 // pred_region
        %s242 = smul.u32 32, %s13
        %p243 = scmp.lt.s32.totalorder %s242, 63
        %s244 = scalar_select %p243, %s242, 63
        %s245 = smul.addr %s244, 8
        %s246 = scalar_lea.vmem %s6, %s245
        %s247 = smul.u32 32, %s13
      $region44: #{basic_block_forward.7} parent=35 // pred_fallthru
        _
    $region36: #{basic_block_forward.7} parent=5 // pred_fallthru
      _
    %p248 = scmp.le.s32.totalorder 1, %s13
    %p249 = scmp.lt.s32.totalorder %s13, 3
    %p250 = pnand %p248, %p249
    %p251 = pneg %p250
    // Predicated region
    $region45: #{basic_block_forward.7} parent=5 // pred_check
      _
    $region46: #{basic_block_forward.7} parent=5 // pred_check_branch
      %253 = sbr.rel (%p250) target = $region48
    $region47: #{basic_block_forward.7} parent=5 // pred_region
      %s254 = ssub.s32 %s13, 1
      %s255 = smul.u32 32, %s18
      %p256 = scmp.lt.s32.totalorder %s255, 63
      %s257 = scalar_select %p256, %s255, 63
      %s258 = smul.addr %s257, 8
      %s259 = scalar_lea.vmem %s0, %s258
      %p260 = pneg %p39
      %p261 = pneg %p36
      %p262 = pneg %p60
      %p263 = pneg %p57
      %p264 = pneg %p81
      %p265 = pneg %p78
      %p266 = pneg %p102
      %p267 = pneg %p99
      %p268 = pneg %p123
      %p269 = pneg %p120
      %p270 = pneg %p144
      %p271 = pneg %p141
      %s272 = smul.u32 32, %s18
      %p273 = scmp.lt.s32.totalorder %s272, 63
      %s274 = scalar_select %p273, %s272, 63
      %s275 = smul.addr %s274, 8
      %s276 = scalar_lea.vmem %s6, %s275
      %p277 = pneg %p170
      %p278 = pneg %p167
      %p279 = pneg %p196
      %p280 = pneg %p193
      %s281 = smul.u32 32, %s18
      %p282 = scmp.lt.s32.totalorder %s281, 63
      %s283 = scalar_select %p282, %s281, 63
      %s284 = smul.addr %s283, 8
      %s285 = scalar_lea.vmem %s7, %s284
      %s286 = smul.u32 32, %s18
      %p287 = scmp.lt.s32.totalorder %s286, 63
      %s288 = scalar_select %p287, %s286, 63
      %s289 = smul.addr %s288, 8
      %s290 = scalar_lea.vmem %s0, %s289
      %s291 = smul.u32 32, %s18
      %s292 = smul.u32 32, %s18
      %p293 = scmp.lt.s32.totalorder %s292, 63
      %s294 = scalar_select %p293, %s292, 63
      %s295 = smul.addr %s294, 8
      %s296 = scalar_lea.vmem %s6, %s295
      %s297 = smul.u32 32, %s18
      %s298 = smul.u32 32, %s18
      %p299 = scmp.lt.s32.totalorder %s298, 63
      %s300 = scalar_select %p299, %s298, 63
      %s301 = smul.addr %s300, 8
      %s302 = scalar_lea.vmem %s7, %s301
      %s303 = smul.u32 32, %s18
      %v304 = vld [vmem:[%s2] sm:$0x1]
      %v305 = vmul.f32 %v304, 0.001953125
      %v306 = vld [vmem:[%s3] sm:$0x1]
      %v307 = vmul.f32 %v306, 0.001953125
      %v308 = vmul.f32 %v305, %v305
      %v309 = vsub.f32 %v307, %v308
      %v310 = vmax.f32 %v309, 0.0
      %v311 = vadd.f32 %v310, 1e-05
      %v312 = vrsqrt.pop %v311
      %v313 = vld [vmem:[%s4] sm:$0x1]
      %v314 = vmul.f32 %v313, %v312
      %v315 = vld [vmem:[%s5] sm:$0x1]
      %v316 = vmul.f32 %v305, %v314
      %v317 = vsub.f32 %v315, %v316
      %v318 = vld [vmem:[%s290] sm:$0xff]
      %v319 = vld [vmem:[%s290 + $0x8] sm:$0xff]
      %v320 = vld [vmem:[%s290 + $0x10] sm:$0xff]
      %v321 = vld [vmem:[%s290 + $0x18] sm:$0xff]
      %v322 = vld [vmem:[%s290 + $0x20] sm:$0xff]
      %v323 = vld [vmem:[%s290 + $0x28] sm:$0xff]
      %v324 = vld [vmem:[%s290 + $0x30] sm:$0xff]
      %v325 = vld [vmem:[%s290 + $0x38] sm:$0xff]
      %v326 = vld [vmem:[%s290 + $0x40] sm:$0xff]
      %v327 = vld [vmem:[%s290 + $0x48] sm:$0xff]
      %v328 = vld [vmem:[%s290 + $0x50] sm:$0xff]
      %v329 = vld [vmem:[%s290 + $0x58] sm:$0xff]
      %v330 = vld [vmem:[%s290 + $0x60] sm:$0xff]
      %v331 = vld [vmem:[%s290 + $0x68] sm:$0xff]
      %v332 = vld [vmem:[%s290 + $0x70] sm:$0xff]
      %v333 = vld [vmem:[%s290 + $0x78] sm:$0xff]
      %v334 = vld [vmem:[%s290 + $0x80] sm:$0xff]
      %v335 = vld [vmem:[%s290 + $0x88] sm:$0xff]
      %v336 = vld [vmem:[%s290 + $0x90] sm:$0xff]
      %v337 = vld [vmem:[%s290 + $0x98] sm:$0xff]
      %v338 = vld [vmem:[%s290 + $0xa0] sm:$0xff]
      %v339 = vld [vmem:[%s290 + $0xa8] sm:$0xff]
      %v340 = vld [vmem:[%s290 + $0xb0] sm:$0xff]
      %v341 = vld [vmem:[%s290 + $0xb8] sm:$0xff]
      %v342 = vld [vmem:[%s290 + $0xc0] sm:$0xff]
      %v343 = vld [vmem:[%s290 + $0xc8] sm:$0xff]
      %v344 = vld [vmem:[%s290 + $0xd0] sm:$0xff]
      %v345 = vld [vmem:[%s290 + $0xd8] sm:$0xff]
      %v346 = vld [vmem:[%s290 + $0xe0] sm:$0xff]
      %v347 = vld [vmem:[%s290 + $0xe8] sm:$0xff]
      %v348 = vld [vmem:[%s290 + $0xf0] sm:$0xff]
      %v349 = vld [vmem:[%s290 + $0xf8] sm:$0xff]
      %v350 = vld [vmem:[%s1] sm:$0xff]
      %v351 = vld [vmem:[%s1 + $0x8] sm:$0xff]
      %v352 = vld [vmem:[%s1 + $0x10] sm:$0xff]
      %v353 = vld [vmem:[%s1 + $0x18] sm:$0xff]
      %v354 = vld [vmem:[%s1 + $0x20] sm:$0xff]
      %v355 = vld [vmem:[%s1 + $0x28] sm:$0xff]
      %v356 = vld [vmem:[%s1 + $0x30] sm:$0xff]
      %v357 = vld [vmem:[%s1 + $0x38] sm:$0xff]
      %v358 = vld [vmem:[%s1 + $0x40] sm:$0xff]
      %v359 = vld [vmem:[%s1 + $0x48] sm:$0xff]
      %v360 = vld [vmem:[%s1 + $0x50] sm:$0xff]
      %v361 = vld [vmem:[%s1 + $0x58] sm:$0xff]
      %v362 = vld [vmem:[%s1 + $0x60] sm:$0xff]
      %v363 = vld [vmem:[%s1 + $0x68] sm:$0xff]
      %v364 = vld [vmem:[%s1 + $0x70] sm:$0xff]
      %v365 = vld [vmem:[%s1 + $0x78] sm:$0xff]
      %366 = vmatprep.subr.mxu0 0.0
      %367 = vmatpush1.msra.mxu0 %v350
      %368 = vmatprep.subr.mxu0 0.0
      %369 = vmatpush1.msra.mxu0 %v351
      %370 = vmatprep.subr.mxu0 0.0
      %371 = vmatpush1.msra.mxu0 %v352
      %372 = vmatprep.subr.mxu0 0.0
      %373 = vmatpush1.msra.mxu0 %v353
      %374 = vmatprep.subr.mxu0 0.0
      %375 = vmatpush1.msra.mxu0 %v354
      %376 = vmatprep.subr.mxu0 0.0
      %377 = vmatpush1.msra.mxu0 %v355
      %378 = vmatprep.subr.mxu0 0.0
      %379 = vmatpush1.msra.mxu0 %v356
      %380 = vmatprep.subr.mxu0 0.0
      %381 = vmatpush1.msra.mxu0 %v357
      %382 = vmatprep.subr.mxu0 0.0
      %383 = vmatpush1.msra.mxu0 %v358
      %384 = vmatprep.subr.mxu0 0.0
      %385 = vmatpush1.msra.mxu0 %v359
      %386 = vmatprep.subr.mxu0 0.0
      %387 = vmatpush1.msra.mxu0 %v360
      %388 = vmatprep.subr.mxu0 0.0
      %389 = vmatpush1.msra.mxu0 %v361
      %390 = vmatprep.subr.mxu0 0.0
      %391 = vmatpush1.msra.mxu0 %v362
      %392 = vmatprep.subr.mxu0 0.0
      %393 = vmatpush1.msra.mxu0 %v363
      %394 = vmatprep.subr.mxu0 0.0
      %395 = vmatpush1.msra.mxu0 %v364
      %396 = vmatprep.subr.mxu0 0.0
      %397 = vmatpush1.msra.mxu0 %v365
      %398 = vmatprep.subr.mxu0 0.0
      %399 = vmatpush1.msra.mxu0 0.0
      %400 = vmatprep.subr.mxu0 0.0
      %401 = vmatpush1.msra.mxu0 0.0
      %402 = vmatprep.subr.mxu0 0.0
      %403 = vmatpush1.msra.mxu0 0.0
      %404 = vmatprep.subr.mxu0 0.0
      %405 = vmatpush1.msra.mxu0 0.0
      %406 = vmatprep.subr.mxu0 0.0
      %407 = vmatpush1.msra.mxu0 0.0
      %408 = vmatprep.subr.mxu0 0.0
      %409 = vmatpush1.msra.mxu0 0.0
      %410 = vmatprep.subr.mxu0 0.0
      %411 = vmatpush1.msra.mxu0 0.0
      %412 = vmatprep.subr.mxu0 0.0
      %413 = vmatpush1.msra.mxu0 0.0
      %414 = vmatprep.subr.mxu0 0.0
      %415 = vmatpush1.msra.mxu0 0.0
      %416 = vmatprep.subr.mxu0 0.0
      %417 = vmatpush1.msra.mxu0 0.0
      %418 = vmatprep.subr.mxu0 0.0
      %419 = vmatpush1.msra.mxu0 0.0
      %420 = vmatprep.subr.mxu0 0.0
      %421 = vmatpush1.msra.mxu0 0.0
      %422 = vmatprep.subr.mxu0 0.0
      %423 = vmatpush1.msra.mxu0 0.0
      %424 = vmatprep.subr.mxu0 0.0
      %425 = vmatpush1.msra.mxu0 0.0
      %426 = vmatprep.subr.mxu0 0.0
      %427 = vmatpush1.msra.mxu0 0.0
      %428 = vmatprep.subr.mxu0 0.0
      %429 = vmatpush1.msra.mxu0 0.0
      %430 = vmatprep.mubr.f32.mxu0 0.0
      %431 = vmatmul.mubr.f32.gmra.mrb[0].mxu0 %v318
      %v432 = vpop.f32.mrb[0].mxu0
      %v433 = vadd.f32 0.0, %v432
      %v434 = vpop.f32.mrb[0].mxu0
      %435 = vmatprep.mubr.f32.mxu0 0.0
      %436 = vmatmul.mubr.f32.gmra.mrb[0].mxu0 %v319
      %v437 = vpop.f32.mrb[0].mxu0
      %v438 = vadd.f32 0.0, %v437
      %v439 = vpop.f32.mrb[0].mxu0
      %440 = vmatprep.mubr.f32.mxu0 0.0
      %441 = vmatmul.mubr.f32.gmra.mrb[0].mxu0 %v320
      %v442 = vpop.f32.mrb[0].mxu0
      %v443 = vadd.f32 0.0, %v442
      %v444 = vpop.f32.mrb[0].mxu0
      %445 = vmatprep.mubr.f32.mxu0 0.0
      %446 = vmatmul.mubr.f32.gmra.mrb[0].mxu0 %v321
      %v447 = vpop.f32.mrb[0].mxu0
      %v448 = vadd.f32 0.0, %v447
      %v449 = vpop.f32.mrb[0].mxu0
      %450 = vmatprep.mubr.f32.mxu0 0.0
      %451 = vmatmul.mubr.f32.gmra.mrb[0].mxu0 %v322
      %v452 = vpop.f32.mrb[0].mxu0
      %v453 = vadd.f32 0.0, %v452
      %v454 = vpop.f32.mrb[0].mxu0
      %455 = vmatprep.mubr.f32.mxu0 0.0
      %456 = vmatmul.mubr.f32.gmra.mrb[0].mxu0 %v323
      %v457 = vpop.f32.mrb[0].mxu0
      %v458 = vadd.f32 0.0, %v457
      %v459 = vpop.f32.mrb[0].mxu0
      %460 = vmatprep.mubr.f32.mxu0 0.0
      %461 = vmatmul.mubr.f32.gmra.mrb[0].mxu0 %v324
      %v462 = vpop.f32.mrb[0].mxu0
      %v463 = vadd.f32 0.0, %v462
      %v464 = vpop.f32.mrb[0].mxu0
      %465 = vmatprep.mubr.f32.mxu0 0.0
      %466 = vmatmul.mubr.f32.gmra.mrb[0].mxu0 %v325
      %v467 = vpop.f32.mrb[0].mxu0
      %v468 = vadd.f32 0.0, %v467
      %v469 = vpop.f32.mrb[0].mxu0
      %470 = vmatprep.mubr.f32.mxu0 0.0
      %471 = vmatmul.mubr.f32.gmra.mrb[0].mxu0 %v326
      %v472 = vpop.f32.mrb[0].mxu0
      %v473 = vadd.f32 0.0, %v472
      %v474 = vpop.f32.mrb[0].mxu0
      %475 = vmatprep.mubr.f32.mxu0 0.0
      %476 = vmatmul.mubr.f32.gmra.mrb[0].mxu0 %v327
      %v477 = vpop.f32.mrb[0].mxu0
      %v478 = vadd.f32 0.0, %v477
      %v479 = vpop.f32.mrb[0].mxu0
      %480 = vmatprep.mubr.f32.mxu0 0.0
      %481 = vmatmul.mubr.f32.gmra.mrb[0].mxu0 %v328
      %v482 = vpop.f32.mrb[0].mxu0
      %v483 = vadd.f32 0.0, %v482
      %v484 = vpop.f32.mrb[0].mxu0
      %485 = vmatprep.mubr.f32.mxu0 0.0
      %486 = vmatmul.mubr.f32.gmra.mrb[0].mxu0 %v329
      %v487 = vpop.f32.mrb[0].mxu0
      %v488 = vadd.f32 0.0, %v487
      %v489 = vpop.f32.mrb[0].mxu0
      %490 = vmatprep.mubr.f32.mxu0 0.0
      %491 = vmatmul.mubr.f32.gmra.mrb[0].mxu0 %v330
      %v492 = vpop.f32.mrb[0].mxu0
      %v493 = vadd.f32 0.0, %v492
      %v494 = vpop.f32.mrb[0].mxu0
      %495 = vmatprep.mubr.f32.mxu0 0.0
      %496 = vmatmul.mubr.f32.gmra.mrb[0].mxu0 %v331
      %v497 = vpop.f32.mrb[0].mxu0
      %v498 = vadd.f32 0.0, %v497
      %v499 = vpop.f32.mrb[0].mxu0
      %500 = vmatprep.mubr.f32.mxu0 0.0
      %501 = vmatmul.mubr.f32.gmra.mrb[0].mxu0 %v332
      %v502 = vpop.f32.mrb[0].mxu0
      %v503 = vadd.f32 0.0, %v502
      %v504 = vpop.f32.mrb[0].mxu0
      %505 = vmatprep.mubr.f32.mxu0 0.0
      %506 = vmatmul.mubr.f32.gmra.mrb[0].mxu0 %v333
      %v507 = vpop.f32.mrb[0].mxu0
      %v508 = vadd.f32 0.0, %v507
      %v509 = vpop.f32.mrb[0].mxu0
      %510 = vmatprep.mubr.f32.mxu0 0.0
      %511 = vmatmul.mubr.f32.gmra.mrb[0].mxu0 %v334
      %v512 = vpop.f32.mrb[0].mxu0
      %v513 = vadd.f32 0.0, %v512
      %v514 = vpop.f32.mrb[0].mxu0
      %515 = vmatprep.mubr.f32.mxu0 0.0
      %516 = vmatmul.mubr.f32.gmra.mrb[0].mxu0 %v335
      %v517 = vpop.f32.mrb[0].mxu0
      %v518 = vadd.f32 0.0, %v517
      %v519 = vpop.f32.mrb[0].mxu0
      %520 = vmatprep.mubr.f32.mxu0 0.0
      %521 = vmatmul.mubr.f32.gmra.mrb[0].mxu0 %v336
      %v522 = vpop.f32.mrb[0].mxu0
      %v523 = vadd.f32 0.0, %v522
      %v524 = vpop.f32.mrb[0].mxu0
      %525 = vmatprep.mubr.f32.mxu0 0.0
      %526 = vmatmul.mubr.f32.gmra.mrb[0].mxu0 %v337
      %v527 = vpop.f32.mrb[0].mxu0
      %v528 = vadd.f32 0.0, %v527
      %v529 = vpop.f32.mrb[0].mxu0
      %530 = vmatprep.mubr.f32.mxu0 0.0
      %531 = vmatmul.mubr.f32.gmra.mrb[0].mxu0 %v338
      %v532 = vpop.f32.mrb[0].mxu0
      %v533 = vadd.f32 0.0, %v532
      %v534 = vpop.f32.mrb[0].mxu0
      %535 = vmatprep.mubr.f32.mxu0 0.0
      %536 = vmatmul.mubr.f32.gmra.mrb[0].mxu0 %v339
      %v537 = vpop.f32.mrb[0].mxu0
      %v538 = vadd.f32 0.0, %v537
      %v539 = vpop.f32.mrb[0].mxu0
      %540 = vmatprep.mubr.f32.mxu0 0.0
      %541 = vmatmul.mubr.f32.gmra.mrb[0].mxu0 %v340
      %v542 = vpop.f32.mrb[0].mxu0
      %v543 = vadd.f32 0.0, %v542
      %v544 = vpop.f32.mrb[0].mxu0
      %545 = vmatprep.mubr.f32.mxu0 0.0
      %546 = vmatmul.mubr.f32.gmra.mrb[0].mxu0 %v341
      %v547 = vpop.f32.mrb[0].mxu0
      %v548 = vadd.f32 0.0, %v547
      %v549 = vpop.f32.mrb[0].mxu0
      %550 = vmatprep.mubr.f32.mxu0 0.0
      %551 = vmatmul.mubr.f32.gmra.mrb[0].mxu0 %v342
      %v552 = vpop.f32.mrb[0].mxu0
      %v553 = vadd.f32 0.0, %v552
      %v554 = vpop.f32.mrb[0].mxu0
      %555 = vmatprep.mubr.f32.mxu0 0.0
      %556 = vmatmul.mubr.f32.gmra.mrb[0].mxu0 %v343
      %v557 = vpop.f32.mrb[0].mxu0
      %v558 = vadd.f32 0.0, %v557
      %v559 = vpop.f32.mrb[0].mxu0
      %560 = vmatprep.mubr.f32.mxu0 0.0
      %561 = vmatmul.mubr.f32.gmra.mrb[0].mxu0 %v344
      %v562 = vpop.f32.mrb[0].mxu0
      %v563 = vadd.f32 0.0, %v562
      %v564 = vpop.f32.mrb[0].mxu0
      %565 = vmatprep.mubr.f32.mxu0 0.0
      %566 = vmatmul.mubr.f32.gmra.mrb[0].mxu0 %v345
      %v567 = vpop.f32.mrb[0].mxu0
      %v568 = vadd.f32 0.0, %v567
      %v569 = vpop.f32.mrb[0].mxu0
      %570 = vmatprep.mubr.f32.mxu0 0.0
      %571 = vmatmul.mubr.f32.gmra.mrb[0].mxu0 %v346
      %v572 = vpop.f32.mrb[0].mxu0
      %v573 = vadd.f32 0.0, %v572
      %v574 = vpop.f32.mrb[0].mxu0
      %575 = vmatprep.mubr.f32.mxu0 0.0
      %576 = vmatmul.mubr.f32.gmra.mrb[0].mxu0 %v347
      %v577 = vpop.f32.mrb[0].mxu0
      %v578 = vadd.f32 0.0, %v577
      %v579 = vpop.f32.mrb[0].mxu0
      %580 = vmatprep.mubr.f32.mxu0 0.0
      %581 = vmatmul.mubr.f32.gmra.mrb[0].mxu0 %v348
      %v582 = vpop.f32.mrb[0].mxu0
      %v583 = vadd.f32 0.0, %v582
      %v584 = vpop.f32.mrb[0].mxu0
      %585 = vmatprep.mubr.f32.mxu0 0.0
      %586 = vmatmul.mubr.f32.gmra.mrb[0].mxu0 %v349
      %v587 = vpop.f32.mrb[0].mxu0
      %v588 = vadd.f32 0.0, %v587
      %v589 = vpop.f32.mrb[0].mxu0
      %590 = vdwg.mxu0
      %v592 = vlaneseq
      %v593 = vshrl.u32 %v592, 7
      %v594 = vsub.s32 0, %v593
      %v595 = vrot.slane %v314, %v594
      %v597 = vmul.f32 %v433, %v595
      %v598 = vmul.f32 %v438, %v595
      %v599 = vmul.f32 %v443, %v595
      %v600 = vmul.f32 %v448, %v595
      %v601 = vmul.f32 %v453, %v595
      %v602 = vmul.f32 %v458, %v595
      %v603 = vmul.f32 %v463, %v595
      %v604 = vmul.f32 %v468, %v595
      %v605 = vmul.f32 %v473, %v595
      %v606 = vmul.f32 %v478, %v595
      %v607 = vmul.f32 %v483, %v595
      %v608 = vmul.f32 %v488, %v595
      %v609 = vmul.f32 %v493, %v595
      %v610 = vmul.f32 %v498, %v595
      %v611 = vmul.f32 %v503, %v595
      %v612 = vmul.f32 %v508, %v595
      %v613 = vmul.f32 %v513, %v595
      %v614 = vmul.f32 %v518, %v595
      %v615 = vmul.f32 %v523, %v595
      %v616 = vmul.f32 %v528, %v595
      %v617 = vmul.f32 %v533, %v595
      %v618 = vmul.f32 %v538, %v595
      %v619 = vmul.f32 %v543, %v595
      %v620 = vmul.f32 %v548, %v595
      %v621 = vmul.f32 %v553, %v595
      %v622 = vmul.f32 %v558, %v595
      %v623 = vmul.f32 %v563, %v595
      %v624 = vmul.f32 %v568, %v595
      %v625 = vmul.f32 %v573, %v595
      %v626 = vmul.f32 %v578, %v595
      %v627 = vmul.f32 %v583, %v595
      %v628 = vmul.f32 %v588, %v595
      %v630 = vlaneseq
      %v631 = vshrl.u32 %v630, 7
      %v632 = vsub.s32 0, %v631
      %v633 = vrot.slane %v317, %v632
      %v635 = vadd.f32 %v597, %v633
      %v636 = vadd.f32 %v598, %v633
      %v637 = vadd.f32 %v599, %v633
      %v638 = vadd.f32 %v600, %v633
      %v639 = vadd.f32 %v601, %v633
      %v640 = vadd.f32 %v602, %v633
      %v641 = vadd.f32 %v603, %v633
      %v642 = vadd.f32 %v604, %v633
      %v643 = vadd.f32 %v605, %v633
      %v644 = vadd.f32 %v606, %v633
      %v645 = vadd.f32 %v607, %v633
      %v646 = vadd.f32 %v608, %v633
      %v647 = vadd.f32 %v609, %v633
      %v648 = vadd.f32 %v610, %v633
      %v649 = vadd.f32 %v611, %v633
      %v650 = vadd.f32 %v612, %v633
      %v651 = vadd.f32 %v613, %v633
      %v652 = vadd.f32 %v614, %v633
      %v653 = vadd.f32 %v615, %v633
      %v654 = vadd.f32 %v616, %v633
      %v655 = vadd.f32 %v617, %v633
      %v656 = vadd.f32 %v618, %v633
      %v657 = vadd.f32 %v619, %v633
      %v658 = vadd.f32 %v620, %v633
      %v659 = vadd.f32 %v621, %v633
      %v660 = vadd.f32 %v622, %v633
      %v661 = vadd.f32 %v623, %v633
      %v662 = vadd.f32 %v624, %v633
      %v663 = vadd.f32 %v625, %v633
      %v664 = vadd.f32 %v626, %v633
      %v665 = vadd.f32 %v627, %v633
      %v666 = vadd.f32 %v628, %v633
      %v667 = vld [vmem:[%s296] sm:$0xff]
      %v668 = vld [vmem:[%s296 + $0x8] sm:$0xff]
      %v669 = vld [vmem:[%s296 + $0x10] sm:$0xff]
      %v670 = vld [vmem:[%s296 + $0x18] sm:$0xff]
      %v671 = vld [vmem:[%s296 + $0x20] sm:$0xff]
      %v672 = vld [vmem:[%s296 + $0x28] sm:$0xff]
      %v673 = vld [vmem:[%s296 + $0x30] sm:$0xff]
      %v674 = vld [vmem:[%s296 + $0x38] sm:$0xff]
      %v675 = vld [vmem:[%s296 + $0x40] sm:$0xff]
      %v676 = vld [vmem:[%s296 + $0x48] sm:$0xff]
      %v677 = vld [vmem:[%s296 + $0x50] sm:$0xff]
      %v678 = vld [vmem:[%s296 + $0x58] sm:$0xff]
      %v679 = vld [vmem:[%s296 + $0x60] sm:$0xff]
      %v680 = vld [vmem:[%s296 + $0x68] sm:$0xff]
      %v681 = vld [vmem:[%s296 + $0x70] sm:$0xff]
      %v682 = vld [vmem:[%s296 + $0x78] sm:$0xff]
      %v683 = vld [vmem:[%s296 + $0x80] sm:$0xff]
      %v684 = vld [vmem:[%s296 + $0x88] sm:$0xff]
      %v685 = vld [vmem:[%s296 + $0x90] sm:$0xff]
      %v686 = vld [vmem:[%s296 + $0x98] sm:$0xff]
      %v687 = vld [vmem:[%s296 + $0xa0] sm:$0xff]
      %v688 = vld [vmem:[%s296 + $0xa8] sm:$0xff]
      %v689 = vld [vmem:[%s296 + $0xb0] sm:$0xff]
      %v690 = vld [vmem:[%s296 + $0xb8] sm:$0xff]
      %v691 = vld [vmem:[%s296 + $0xc0] sm:$0xff]
      %v692 = vld [vmem:[%s296 + $0xc8] sm:$0xff]
      %v693 = vld [vmem:[%s296 + $0xd0] sm:$0xff]
      %v694 = vld [vmem:[%s296 + $0xd8] sm:$0xff]
      %v695 = vld [vmem:[%s296 + $0xe0] sm:$0xff]
      %v696 = vld [vmem:[%s296 + $0xe8] sm:$0xff]
      %v697 = vld [vmem:[%s296 + $0xf0] sm:$0xff]
      %v698 = vld [vmem:[%s296 + $0xf8] sm:$0xff]
      %v699 = vadd.f32 %v635, %v667
      %v700 = vadd.f32 %v636, %v668
      %v701 = vadd.f32 %v637, %v669
      %v702 = vadd.f32 %v638, %v670
      %v703 = vadd.f32 %v639, %v671
      %v704 = vadd.f32 %v640, %v672
      %v705 = vadd.f32 %v641, %v673
      %v706 = vadd.f32 %v642, %v674
      %v707 = vadd.f32 %v643, %v675
      %v708 = vadd.f32 %v644, %v676
      %v709 = vadd.f32 %v645, %v677
      %v710 = vadd.f32 %v646, %v678
      %v711 = vadd.f32 %v647, %v679
      %v712 = vadd.f32 %v648, %v680
      %v713 = vadd.f32 %v649, %v681
      %v714 = vadd.f32 %v650, %v682
      %v715 = vadd.f32 %v651, %v683
      %v716 = vadd.f32 %v652, %v684
      %v717 = vadd.f32 %v653, %v685
      %v718 = vadd.f32 %v654, %v686
      %v719 = vadd.f32 %v655, %v687
      %v720 = vadd.f32 %v656, %v688
      %v721 = vadd.f32 %v657, %v689
      %v722 = vadd.f32 %v658, %v690
      %v723 = vadd.f32 %v659, %v691
      %v724 = vadd.f32 %v660, %v692
      %v725 = vadd.f32 %v661, %v693
      %v726 = vadd.f32 %v662, %v694
      %v727 = vadd.f32 %v663, %v695
      %v728 = vadd.f32 %v664, %v696
      %v729 = vadd.f32 %v665, %v697
      %v730 = vadd.f32 %v666, %v698
      %v731 = vmax.f32 %v699, 0.0
      %v732 = vmax.f32 %v700, 0.0
      %v733 = vmax.f32 %v701, 0.0
      %v734 = vmax.f32 %v702, 0.0
      %v735 = vmax.f32 %v703, 0.0
      %v736 = vmax.f32 %v704, 0.0
      %v737 = vmax.f32 %v705, 0.0
      %v738 = vmax.f32 %v706, 0.0
      %v739 = vmax.f32 %v707, 0.0
      %v740 = vmax.f32 %v708, 0.0
      %v741 = vmax.f32 %v709, 0.0
      %v742 = vmax.f32 %v710, 0.0
      %v743 = vmax.f32 %v711, 0.0
      %v744 = vmax.f32 %v712, 0.0
      %v745 = vmax.f32 %v713, 0.0
      %v746 = vmax.f32 %v714, 0.0
      %v747 = vmax.f32 %v715, 0.0
      %v748 = vmax.f32 %v716, 0.0
      %v749 = vmax.f32 %v717, 0.0
      %v750 = vmax.f32 %v718, 0.0
      %v751 = vmax.f32 %v719, 0.0
      %v752 = vmax.f32 %v720, 0.0
      %v753 = vmax.f32 %v721, 0.0
      %v754 = vmax.f32 %v722, 0.0
      %v755 = vmax.f32 %v723, 0.0
      %v756 = vmax.f32 %v724, 0.0
      %v757 = vmax.f32 %v725, 0.0
      %v758 = vmax.f32 %v726, 0.0
      %v759 = vmax.f32 %v727, 0.0
      %v760 = vmax.f32 %v728, 0.0
      %v761 = vmax.f32 %v729, 0.0
      %v762 = vmax.f32 %v730, 0.0
      %763 = vst [vmem:[%s302] sm:$0xff] %v731
      %764 = vst [vmem:[%s302 + $0x8] sm:$0xff] %v732
      %765 = vst [vmem:[%s302 + $0x10] sm:$0xff] %v733
      %766 = vst [vmem:[%s302 + $0x18] sm:$0xff] %v734
      %767 = vst [vmem:[%s302 + $0x20] sm:$0xff] %v735
      %768 = vst [vmem:[%s302 + $0x28] sm:$0xff] %v736
      %769 = vst [vmem:[%s302 + $0x30] sm:$0xff] %v737
      %770 = vst [vmem:[%s302 + $0x38] sm:$0xff] %v738
      %771 = vst [vmem:[%s302 + $0x40] sm:$0xff] %v739
      %772 = vst [vmem:[%s302 + $0x48] sm:$0xff] %v740
      %773 = vst [vmem:[%s302 + $0x50] sm:$0xff] %v741
      %774 = vst [vmem:[%s302 + $0x58] sm:$0xff] %v742
      %775 = vst [vmem:[%s302 + $0x60] sm:$0xff] %v743
      %776 = vst [vmem:[%s302 + $0x68] sm:$0xff] %v744
      %777 = vst [vmem:[%s302 + $0x70] sm:$0xff] %v745
      %778 = vst [vmem:[%s302 + $0x78] sm:$0xff] %v746
      %779 = vst [vmem:[%s302 + $0x80] sm:$0xff] %v747
      %780 = vst [vmem:[%s302 + $0x88] sm:$0xff] %v748
      %781 = vst [vmem:[%s302 + $0x90] sm:$0xff] %v749
      %782 = vst [vmem:[%s302 + $0x98] sm:$0xff] %v750
      %783 = vst [vmem:[%s302 + $0xa0] sm:$0xff] %v751
      %784 = vst [vmem:[%s302 + $0xa8] sm:$0xff] %v752
      %785 = vst [vmem:[%s302 + $0xb0] sm:$0xff] %v753
      %786 = vst [vmem:[%s302 + $0xb8] sm:$0xff] %v754
      %787 = vst [vmem:[%s302 + $0xc0] sm:$0xff] %v755
      %788 = vst [vmem:[%s302 + $0xc8] sm:$0xff] %v756
      %789 = vst [vmem:[%s302 + $0xd0] sm:$0xff] %v757
      %790 = vst [vmem:[%s302 + $0xd8] sm:$0xff] %v758
      %791 = vst [vmem:[%s302 + $0xe0] sm:$0xff] %v759
      %792 = vst [vmem:[%s302 + $0xe8] sm:$0xff] %v760
      %793 = vst [vmem:[%s302 + $0xf0] sm:$0xff] %v761
      %794 = vst [vmem:[%s302 + $0xf8] sm:$0xff] %v762
      %s795 = smul.u32 32, %s18
      %p796 = scmp.lt.s32.totalorder %s795, 63
      %s797 = scalar_select %p796, %s795, 63
      %s798 = smul.addr %s797, 8
      %s799 = scalar_lea.vmem %s7, %s798
      // Predicated region
      $region49: #{basic_block_forward.7} parent=47 // pred_check
        %p800 = pneg %p193
      $region50: #{basic_block_forward.7} parent=47 // pred_check_branch
        %802 = sbr.rel (%p800) target = $region52
      $region51: #{basic_block_forward.7} parent=47 // pred_region
        %s803 = smul.u32 32, %s18
      $region52: #{basic_block_forward.7} parent=47 // pred_fallthru
        _
    $region48: #{basic_block_forward.7} parent=5 // pred_fallthru
      _
    %p804 = scmp.le.s32.totalorder 2, %s13
    // Predicated region
    $region53: #{basic_block_forward.7} parent=5 // pred_check
      %p805 = pneg %p804
    $region54: #{basic_block_forward.7} parent=5 // pred_check_branch
      %807 = sbr.rel (%p805) target = $region56
    $region55: #{basic_block_forward.7} parent=5 // pred_region
      %s808 = ssub.s32 %s13, 2
      // Predicated region
      $region57: #{basic_block_forward.7} parent=55 // pred_check
        %p809 = pneg %p199
      $region58: #{basic_block_forward.7} parent=55 // pred_check_branch
        %811 = sbr.rel (%p809) target = $region60
      $region59: #{basic_block_forward.7} parent=55 // pred_region
        %s812 = smul.u32 32, %s19
        %p813 = scmp.lt.s32.totalorder %s812, 63
        %s814 = scalar_select %p813, %s812, 63
        %s815 = smul.addr %s814, 8
        %s816 = scalar_lea.vmem %s7, %s815
      $region60: #{basic_block_forward.7} parent=55 // pred_fallthru
        _
    $region56: #{basic_block_forward.7} parent=5 // pred_fallthru
      _
  $region6: #{basic_block_forward.7} parent=0 // loop_footer
    %s17 = sadd.s32 1, %s13
  $region7: #{basic_block_forward.7} parent=0 // loop_footer_branch
    %12 = sbr.rel target = $region3
  $region8: #{basic_block_forward.7} parent=0 // loop_exit
    _

</llo_original>
